<compile_context>
chip_gen: v5e
topology: v5e:2x2
jax: 0.10.0
libtpu: 0.0.40
codegen_flags: <defaults>
</compile_context>

<pallas_src>
import math
import functools

import jax
import jax.numpy as jnp
from jax import lax
from jax.experimental import pallas as pl
from jax.experimental.pallas import tpu as pltpu


def _attn_kernel(*refs, has_mask, heads_per_group, head_dim):
    # refs (has_mask=True):  x, wqkv, bqkv, mask, out
    # refs (has_mask=False): x, wqkv, bqkv, out
    if has_mask:
        x_ref, wqkv_ref, bqkv_ref, mask_ref, out_ref = refs
    else:
        x_ref, wqkv_ref, bqkv_ref, out_ref = refs

    grp = pl.program_id(1)
    G, hd = heads_per_group, head_dim
    ghd = G * hd

    x = x_ref[0]                      # [S, H]       bf16
    w = wqkv_ref[grp]                 # [H, 3*G*hd]  bf16 (resident)
    b = bqkv_ref[grp]                 # [1, 3*G*hd]  f32  (resident, tiny)

    # Fused Q/K/V projection: one wide bf16 MXU matmul, f32 accumulation.
    # 1/sqrt(head_dim) is already folded into the Q columns of w and b.
    qkv = jnp.dot(x, w, preferred_element_type=jnp.float32) + b   # [S, 3*G*hd]
    q = qkv[:, 0:ghd].astype(jnp.bfloat16)
    k = qkv[:, ghd:2 * ghd].astype(jnp.bfloat16)
    v = qkv[:, 2 * ghd:3 * ghd].astype(jnp.bfloat16)

    if has_mask:
        mask = mask_ref[0]            # [1, S] -> broadcasts over query rows

    for g in range(G):                # static unroll over heads in this group
        qg = q[:, g * hd:(g + 1) * hd]
        kg = k[:, g * hd:(g + 1) * hd]
        vg = v[:, g * hd:(g + 1) * hd]

        # attention_scores = (Q/sqrt(hd)) K^T  (+ attention_mask), f32 accum,
        # contracting last dims (no k.T / XLU transpose).
        scores = lax.dot_general(
            qg, kg, (((1,), (1,)), ((), ())),
            preferred_element_type=jnp.float32)                    # [S, S]
        if has_mask:
            scores = scores + mask

        # numerically stable softmax, normalized AFTER the PV matmul
        m = jnp.max(scores, axis=-1, keepdims=True)
        e = jnp.exp(scores - m)                                    # [S, S] f32
        denom = jnp.sum(e, axis=-1, keepdims=True)                 # [S, 1]

        # TODO(synk): dropout(attention_probs) omitted — identity in eval mode.
        ctx = jnp.dot(e.astype(jnp.bfloat16), vg,
                      preferred_element_type=jnp.float32)          # [S, hd]
        ctx = ctx * pl.reciprocal(denom, approx=True)              # EUP slot

        # write per-head directly into the lane-dense output tile
        out_ref[0, :, g * hd:(g + 1) * hd] = ctx.astype(out_ref.dtype)


def pack_qkv_params(wq, bq, wk, bk, wv, bv, num_heads, heads_per_group=None):
    """Fuse Q/K/V weights+biases into one resident block.

    Intended to be called ONCE at model-load time (pure reshape/concat over
    weights), so the per-call path starts the kernel immediately.
    Weights are stored bf16 (MXU-native, halves resident VMEM + prologue DMA);
    biases stay f32 (negligible size, slightly better accuracy).
    """
    H = wq.shape[0]
    hd = H // num_heads
    if heads_per_group is None:
        # Target >=256 output lanes per head-group (v6e/v7x MXU is 256 wide);
        # fall back to the largest divisor of num_heads not exceeding it.
        heads_per_group = min(num_heads, max(1, 256 // hd))
        while num_heads % heads_per_group:
            heads_per_group -= 1
    G = heads_per_group
    ngroups = num_heads // G
    ghd = G * hd
    scale = 1.0 / math.sqrt(hd)

    def per_group_w(w):     # [H, H] -> [ngroups, H, G*hd]
        return w.reshape(H, ngroups, ghd).transpose(1, 0, 2)

    def per_group_b(b):     # [H] -> [ngroups, 1, G*hd]
        return b.reshape(ngroups, 1, ghd)

    # fold 1/sqrt(head_dim) into the Q columns (weights AND bias) here
    wqkv = jnp.concatenate(
        [per_group_w(wq * scale), per_group_w(wk), per_group_w(wv)],
        axis=-1).astype(jnp.bfloat16)
    bqkv = jnp.concatenate(
        [per_group_b(bq * scale), per_group_b(bk), per_group_b(bv)],
        axis=-1).astype(jnp.float32)
    return wqkv, bqkv, G, hd


def _vmem_limit_bytes(B, S, H, ngroups, ghd, G, out_itemsize):
    w_bytes = 2 * ngroups * H * 3 * ghd * 2       # bf16 weights (x2 headroom)
    b_bytes = 2 * ngroups * 3 * ghd * 4
    x_bytes = 2 * S * H * 2                       # double-buffered bf16 block
    mask_bytes = 2 * S * 4
    out_bytes = 2 * S * ghd * out_itemsize
    tmp_bytes = S * 3 * ghd * 4 + 2 * G * S * S * 4   # qkv + scores/e temps
    est = w_bytes + b_bytes + x_bytes + mask_bytes + out_bytes + tmp_bytes
    # headroom; floor at 32 MiB (safe everywhere), cap at v7x 64 MiB per-TC VMEM
    return int(min(64 << 20, max(32 << 20, 2 * est)))


def _attention_call(x_bf16, wqkv, bqkv, mask, out_dtype, *, G, hd,
                    single_buffer_resident):
    B, S, H = x_bf16.shape
    ngroups = wqkv.shape[0]
    ghd = G * hd
    has_mask = mask is not None

    resident_kwargs = {}
    if single_buffer_resident:
        # constant-index resident blocks never touch the 2nd pipeline buffer;
        # single-buffering halves their VMEM footprint.
        resident_kwargs = dict(pipeline_mode=pl.Buffered(1))

    in_specs = [
        # hidden states for batch b
        pl.BlockSpec((1, S, H), lambda b, g: (b, 0, 0)),
        # fused QKV weights: resident (constant index_map -> single DMA)
        pl.BlockSpec((ngroups, H, 3 * ghd), lambda b, g: (0, 0, 0),
                     **resident_kwargs),
        # fused QKV biases: resident
        pl.BlockSpec((ngroups, 1, 3 * ghd), lambda b, g: (0, 0, 0),
                     **resident_kwargs),
    ]
    operands = [x_bf16, wqkv, bqkv]
    if has_mask:
        in_specs.append(pl.BlockSpec((1, 1, S), lambda b, g: (b, 0, 0)))
        operands.append(mask)

    kernel = functools.partial(
        _attn_kernel, has_mask=has_mask, heads_per_group=G, head_dim=hd)

    return pl.pallas_call(
        kernel,
        out_shape=jax.ShapeDtypeStruct((B, S, H), out_dtype),
        grid_spec=pltpu.PrefetchScalarGridSpec(
            num_scalar_prefetch=0,
            grid=(B, ngroups),
            in_specs=in_specs,
            # lane-dense output tile written straight into the [B, S, H] slab
            out_specs=pl.BlockSpec((1, S, ghd), lambda b, g: (b, 0, g)),
        ),
        compiler_params=pltpu.CompilerParams(
            dimension_semantics=("parallel", "parallel"),
            vmem_limit_bytes=_vmem_limit_bytes(
                B, S, H, ngroups, ghd, G, jnp.dtype(out_dtype).itemsize)),
    )(*operands)


def bert_self_attention(hidden_states, wq, bq, wk, bk, wv, bv, num_heads,
                        attention_mask=None, heads_per_group=None, packed=None):
    """hidden_states: [B, S, H]; w*: [H, H] (x @ w convention); b*: [H].
    attention_mask: additive key mask [B, 1, 1, S] (or None). Returns [B, S, H].

    TODO(synk): cross-attention / past_key_value, relative position embeddings,
    head_mask, gabriel_mask, output_attentions and dropout-in-training are not
    implemented (eval-mode self-attention path only).
    TODO(synk): extended masks of shape [B,1,S,S] are not supported by this
    key-broadcast mask path.
    """
    B, S, H = hidden_states.shape
    if packed is None:
        packed = pack_qkv_params(wq, bq, wk, bk, wv, bv, num_heads,
                                 heads_per_group)
    wqkv, bqkv, G, hd = packed

    if attention_mask is None:
        mask = None     # static no-mask path: no zero array, no per-head adds
    else:
        mask = jnp.broadcast_to(
            attention_mask.astype(jnp.float32), (B, 1, 1, S)).reshape(B, 1, S)

    x_bf16 = hidden_states.astype(jnp.bfloat16)   # bf16 MXU operands, f32 accum
    try:
        return _attention_call(x_bf16, wqkv, bqkv, mask, hidden_states.dtype,
                               G=G, hd=hd, single_buffer_resident=True)
    except Exception:
        # pl.Buffered(1) unsupported on this JAX build -> default 2x buffering
        return _attention_call(x_bf16, wqkv, bqkv, mask, hidden_states.dtype,
                               G=G, hd=hd, single_buffer_resident=False)


def _reference(hidden_states, wq, bq, wk, bk, wv, bv, num_heads, attention_mask):
    B, S, H = hidden_states.shape
    hd = H // num_heads

    def proj(w, b):
        y = hidden_states @ w + b
        return y.reshape(B, S, num_heads, hd).transpose(0, 2, 1, 3)

    q, k, v = proj(wq, bq), proj(wk, bk), proj(wv, bv)
    scores = jnp.einsum("bhqd,bhkd->bhqk", q, k) / math.sqrt(hd)
    if attention_mask is not None:
        scores = scores + attention_mask
    probs = jax.nn.softmax(scores, axis=-1)
    ctx = jnp.einsum("bhqk,bhkd->bhqd", probs, v)
    return ctx.transpose(0, 2, 1, 3).reshape(B, S, H)


if __name__ == "__main__":
    B, S, H, NH = 2, 8, 32, 4

    key = jax.random.PRNGKey(0)
    ks = jax.random.split(key, 8)
    hidden = jax.random.normal(ks[0], (B, S, H), dtype=jnp.float32)
    wq = jax.random.normal(ks[1], (H, H), dtype=jnp.float32) * 0.05
    wk = jax.random.normal(ks[2], (H, H), dtype=jnp.float32) * 0.05
    wv = jax.random.normal(ks[3], (H, H), dtype=jnp.float32) * 0.05
    bq = jax.random.normal(ks[4], (H,), dtype=jnp.float32) * 0.01
    bk = jax.random.normal(ks[5], (H,), dtype=jnp.float32) * 0.01
    bv = jax.random.normal(ks[6], (H,), dtype=jnp.float32) * 0.01
    # additive attention mask (0 = keep, -1e9 = masked), shape [B, 1, 1, S]
    attn_mask = jnp.where(
        jax.random.uniform(ks[7], (B, 1, 1, S)) > 0.2, 0.0, -1e9
    ).astype(jnp.float32)

    # Pack fused QKV weights once ("model load" time), reuse across calls.
    packed = pack_qkv_params(wq, bq, wk, bk, wv, bv, NH)

    # masked path
    out = bert_self_attention(hidden, wq, bq, wk, bk, wv, bv, NH, attn_mask,
                              packed=packed)
    out = jax.block_until_ready(out)
    ref = _reference(hidden, wq, bq, wk, bk, wv, bv, NH, attn_mask)
    assert out.shape == (B, S, H)
    # tolerance accounts for bf16 MXU operands + EUP approx reciprocal
    assert jnp.allclose(out, ref, atol=2e-2, rtol=2e-2)

    # static no-mask path
    out_nm = bert_self_attention(hidden, wq, bq, wk, bk, wv, bv, NH, None,
                                 packed=packed)
    out_nm = jax.block_until_ready(out_nm)
    ref_nm = _reference(hidden, wq, bq, wk, bk, wv, bv, NH, None)
    assert jnp.allclose(out_nm, ref_nm, atol=2e-2, rtol=2e-2)

    print("KERNEL_OK")
</pallas_src>

<mosaic_0001>
module attributes {stable_mosaic.version = 11 : i64} {
  func.func @_attn_kernel(%arg0: i32, %arg1: i32, %arg2: memref<1x8x32xbf16, #tpu.memory_space<vmem>>, %arg3: memref<1x32x96xbf16, #tpu.memory_space<vmem>>, %arg4: memref<1x1x96xf32, #tpu.memory_space<vmem>>, %arg5: memref<1x1x8xf32, #tpu.memory_space<vmem>>, %arg6: memref<1x8x32xf32, #tpu.memory_space<vmem>>) attributes {dimension_semantics = [#tpu.dimension_semantics<parallel>, #tpu.dimension_semantics<parallel>], iteration_bounds = array<i64: 2, 1>, scalar_prefetch = 0 : i64, scratch_operands = 0 : i64, tpu.core_type = #tpu.core_type<tc>, window_params = [{transform_indices = @transform_0, window_bounds = array<i64: 1, 8, 32>}, {pipeline_mode = #tpu.pipeline_mode<synchronous>, transform_indices = @transform_1, window_bounds = array<i64: 1, 32, 96>}, {pipeline_mode = #tpu.pipeline_mode<synchronous>, transform_indices = @transform_2, window_bounds = array<i64: 1, 1, 96>}, {transform_indices = @transform_3, window_bounds = array<i64: 1, 1, 8>}, {transform_indices = @transform_4, window_bounds = array<i64: 1, 8, 32>}]} {
    %c0 = arith.constant 0 : index
    %c0_0 = arith.constant 0 : index
    %c0_1 = arith.constant 0 : index
    %0 = vector.load %arg2[%c0, %c0_0, %c0_1] : memref<1x8x32xbf16, #tpu.memory_space<vmem>>, vector<1x8x32xbf16>
    %1 = vector.shape_cast %0 : vector<1x8x32xbf16> to vector<8x32xbf16>
    %2 = arith.index_cast %arg1 : i32 to index
    %c0_2 = arith.constant 0 : index
    %c0_3 = arith.constant 0 : index
    %3 = vector.load %arg3[%2, %c0_2, %c0_3] : memref<1x32x96xbf16, #tpu.memory_space<vmem>>, vector<1x32x96xbf16>
    %4 = vector.shape_cast %3 : vector<1x32x96xbf16> to vector<32x96xbf16>
    %5 = arith.index_cast %arg1 : i32 to index
    %c0_4 = arith.constant 0 : index
    %c0_5 = arith.constant 0 : index
    %6 = vector.load %arg4[%5, %c0_4, %c0_5] : memref<1x1x96xf32, #tpu.memory_space<vmem>>, vector<1x1x96xf32>
    %7 = vector.shape_cast %6 : vector<1x1x96xf32> to vector<1x96xf32>
    %cst = arith.constant dense<0.000000e+00> : vector<8x96xf32>
    %8 = tpu.matmul %1, %4, %cst {dimension_numbers = #tpu.dot_dimension_numbers<[1], [0], [0], [1], [0, 0, 1, 1], [], []>} : vector<8x32xbf16>, vector<32x96xbf16>, vector<8x96xf32> -> vector<8x96xf32>
    %9 = vector.broadcast %7 : vector<1x96xf32> to vector<8x96xf32>
    %10 = arith.addf %8, %9 : vector<8x96xf32>
    %11 = vector.extract_strided_slice %10 {offsets = [0, 0], sizes = [8, 32], strides = [1, 1]} : vector<8x96xf32> to vector<8x32xf32>
    %12 = arith.truncf %11 : vector<8x32xf32> to vector<8x32xbf16>
    %13 = vector.extract_strided_slice %10 {offsets = [0, 32], sizes = [8, 32], strides = [1, 1]} : vector<8x96xf32> to vector<8x32xf32>
    %14 = arith.truncf %13 : vector<8x32xf32> to vector<8x32xbf16>
    %15 = vector.extract_strided_slice %10 {offsets = [0, 64], sizes = [8, 32], strides = [1, 1]} : vector<8x96xf32> to vector<8x32xf32>
    %16 = arith.truncf %15 : vector<8x32xf32> to vector<8x32xbf16>
    %c0_6 = arith.constant 0 : index
    %c0_7 = arith.constant 0 : index
    %c0_8 = arith.constant 0 : index
    %17 = vector.load %arg5[%c0_6, %c0_7, %c0_8] : memref<1x1x8xf32, #tpu.memory_space<vmem>>, vector<1x1x8xf32>
    %18 = vector.shape_cast %17 : vector<1x1x8xf32> to vector<1x8xf32>
    %19 = vector.extract_strided_slice %12 {offsets = [0, 0], sizes = [8, 8], strides = [1, 1]} : vector<8x32xbf16> to vector<8x8xbf16>
    %20 = vector.extract_strided_slice %14 {offsets = [0, 0], sizes = [8, 8], strides = [1, 1]} : vector<8x32xbf16> to vector<8x8xbf16>
    %21 = vector.extract_strided_slice %16 {offsets = [0, 0], sizes = [8, 8], strides = [1, 1]} : vector<8x32xbf16> to vector<8x8xbf16>
    %cst_9 = arith.constant dense<0.000000e+00> : vector<8x8xf32>
    %22 = tpu.matmul %19, %20, %cst_9 {dimension_numbers = #tpu.dot_dimension_numbers<[1], [1], [0], [0], [0, 0, 1, 0], [], []>} : vector<8x8xbf16>, vector<8x8xbf16>, vector<8x8xf32> -> vector<8x8xf32>
    %23 = vector.broadcast %18 : vector<1x8xf32> to vector<8x8xf32>
    %24 = arith.addf %22, %23 : vector<8x8xf32>
    %cst_10 = arith.constant dense<0xFF800000> : vector<8xf32>
    %25 = vector.multi_reduction <maximumf>, %24, %cst_10 [1] : vector<8x8xf32> to vector<8xf32>
    %26 = vector.shape_cast %25 : vector<8xf32> to vector<8x1xf32>
    %27 = vector.broadcast %26 : vector<8x1xf32> to vector<8x8xf32>
    %28 = arith.subf %24, %27 : vector<8x8xf32>
    %29 = math.exp %28 : vector<8x8xf32>
    %cst_11 = arith.constant dense<0.000000e+00> : vector<8xf32>
    %30 = vector.multi_reduction <add>, %29, %cst_11 [1] : vector<8x8xf32> to vector<8xf32>
    %31 = vector.shape_cast %30 : vector<8xf32> to vector<8x1xf32>
    %32 = arith.truncf %29 : vector<8x8xf32> to vector<8x8xbf16>
    %cst_12 = arith.constant dense<0.000000e+00> : vector<8x8xf32>
    %33 = tpu.matmul %32, %21, %cst_12 {dimension_numbers = #tpu.dot_dimension_numbers<[1], [0], [0], [1], [0, 0, 1, 1], [], []>} : vector<8x8xbf16>, vector<8x8xbf16>, vector<8x8xf32> -> vector<8x8xf32>
    %34 = tpu.reciprocal %31 {approx = true} : vector<8x1xf32> -> vector<8x1xf32>
    %35 = vector.broadcast %34 : vector<8x1xf32> to vector<8x8xf32>
    %36 = arith.mulf %33, %35 : vector<8x8xf32>
    %c0_13 = arith.constant 0 : index
    %c0_14 = arith.constant 0 : index
    %c0_15 = arith.constant 0 : index
    %37 = vector.load %arg6[%c0_13, %c0_14, %c0_15] : memref<1x8x32xf32, #tpu.memory_space<vmem>>, vector<1x8x8xf32>
    %38 = vector.shape_cast %37 : vector<1x8x8xf32> to vector<8x8xf32>
    %39 = vector.shape_cast %36 : vector<8x8xf32> to vector<1x8x8xf32>
    tpu.vector_store %arg6[%c0_13, %c0_14, %c0_15], %39 {strides = array<i32>} : memref<1x8x32xf32, #tpu.memory_space<vmem>>, vector<1x8x8xf32>,
    %40 = vector.extract_strided_slice %12 {offsets = [0, 8], sizes = [8, 8], strides = [1, 1]} : vector<8x32xbf16> to vector<8x8xbf16>
    %41 = vector.extract_strided_slice %14 {offsets = [0, 8], sizes = [8, 8], strides = [1, 1]} : vector<8x32xbf16> to vector<8x8xbf16>
    %42 = vector.extract_strided_slice %16 {offsets = [0, 8], sizes = [8, 8], strides = [1, 1]} : vector<8x32xbf16> to vector<8x8xbf16>
    %cst_16 = arith.constant dense<0.000000e+00> : vector<8x8xf32>
    %43 = tpu.matmul %40, %41, %cst_16 {dimension_numbers = #tpu.dot_dimension_numbers<[1], [1], [0], [0], [0, 0, 1, 0], [], []>} : vector<8x8xbf16>, vector<8x8xbf16>, vector<8x8xf32> -> vector<8x8xf32>
    %44 = vector.broadcast %18 : vector<1x8xf32> to vector<8x8xf32>
    %45 = arith.addf %43, %44 : vector<8x8xf32>
    %cst_17 = arith.constant dense<0xFF800000> : vector<8xf32>
    %46 = vector.multi_reduction <maximumf>, %45, %cst_17 [1] : vector<8x8xf32> to vector<8xf32>
    %47 = vector.shape_cast %46 : vector<8xf32> to vector<8x1xf32>
    %48 = vector.broadcast %47 : vector<8x1xf32> to vector<8x8xf32>
    %49 = arith.subf %45, %48 : vector<8x8xf32>
    %50 = math.exp %49 : vector<8x8xf32>
    %cst_18 = arith.constant dense<0.000000e+00> : vector<8xf32>
    %51 = vector.multi_reduction <add>, %50, %cst_18 [1] : vector<8x8xf32> to vector<8xf32>
    %52 = vector.shape_cast %51 : vector<8xf32> to vector<8x1xf32>
    %53 = arith.truncf %50 : vector<8x8xf32> to vector<8x8xbf16>
    %cst_19 = arith.constant dense<0.000000e+00> : vector<8x8xf32>
    %54 = tpu.matmul %53, %42, %cst_19 {dimension_numbers = #tpu.dot_dimension_numbers<[1], [0], [0], [1], [0, 0, 1, 1], [], []>} : vector<8x8xbf16>, vector<8x8xbf16>, vector<8x8xf32> -> vector<8x8xf32>
    %55 = tpu.reciprocal %52 {approx = true} : vector<8x1xf32> -> vector<8x1xf32>
    %56 = vector.broadcast %55 : vector<8x1xf32> to vector<8x8xf32>
    %57 = arith.mulf %54, %56 : vector<8x8xf32>
    %c0_20 = arith.constant 0 : index
    %c0_21 = arith.constant 0 : index
    %c8 = arith.constant 8 : index
    %58 = vector.load %arg6[%c0_20, %c0_21, %c8] : memref<1x8x32xf32, #tpu.memory_space<vmem>>, vector<1x8x8xf32>
    %59 = vector.shape_cast %58 : vector<1x8x8xf32> to vector<8x8xf32>
    %60 = vector.shape_cast %57 : vector<8x8xf32> to vector<1x8x8xf32>
    tpu.vector_store %arg6[%c0_20, %c0_21, %c8], %60 {strides = array<i32>} : memref<1x8x32xf32, #tpu.memory_space<vmem>>, vector<1x8x8xf32>,
    %61 = vector.extract_strided_slice %12 {offsets = [0, 16], sizes = [8, 8], strides = [1, 1]} : vector<8x32xbf16> to vector<8x8xbf16>
    %62 = vector.extract_strided_slice %14 {offsets = [0, 16], sizes = [8, 8], strides = [1, 1]} : vector<8x32xbf16> to vector<8x8xbf16>
    %63 = vector.extract_strided_slice %16 {offsets = [0, 16], sizes = [8, 8], strides = [1, 1]} : vector<8x32xbf16> to vector<8x8xbf16>
    %cst_22 = arith.constant dense<0.000000e+00> : vector<8x8xf32>
    %64 = tpu.matmul %61, %62, %cst_22 {dimension_numbers = #tpu.dot_dimension_numbers<[1], [1], [0], [0], [0, 0, 1, 0], [], []>} : vector<8x8xbf16>, vector<8x8xbf16>, vector<8x8xf32> -> vector<8x8xf32>
    %65 = vector.broadcast %18 : vector<1x8xf32> to vector<8x8xf32>
    %66 = arith.addf %64, %65 : vector<8x8xf32>
    %cst_23 = arith.constant dense<0xFF800000> : vector<8xf32>
    %67 = vector.multi_reduction <maximumf>, %66, %cst_23 [1] : vector<8x8xf32> to vector<8xf32>
    %68 = vector.shape_cast %67 : vector<8xf32> to vector<8x1xf32>
    %69 = vector.broadcast %68 : vector<8x1xf32> to vector<8x8xf32>
    %70 = arith.subf %66, %69 : vector<8x8xf32>
    %71 = math.exp %70 : vector<8x8xf32>
    %cst_24 = arith.constant dense<0.000000e+00> : vector<8xf32>
    %72 = vector.multi_reduction <add>, %71, %cst_24 [1] : vector<8x8xf32> to vector<8xf32>
    %73 = vector.shape_cast %72 : vector<8xf32> to vector<8x1xf32>
    %74 = arith.truncf %71 : vector<8x8xf32> to vector<8x8xbf16>
    %cst_25 = arith.constant dense<0.000000e+00> : vector<8x8xf32>
    %75 = tpu.matmul %74, %63, %cst_25 {dimension_numbers = #tpu.dot_dimension_numbers<[1], [0], [0], [1], [0, 0, 1, 1], [], []>} : vector<8x8xbf16>, vector<8x8xbf16>, vector<8x8xf32> -> vector<8x8xf32>
    %76 = tpu.reciprocal %73 {approx = true} : vector<8x1xf32> -> vector<8x1xf32>
    %77 = vector.broadcast %76 : vector<8x1xf32> to vector<8x8xf32>
    %78 = arith.mulf %75, %77 : vector<8x8xf32>
    %c0_26 = arith.constant 0 : index
    %c0_27 = arith.constant 0 : index
    %c16 = arith.constant 16 : index
    %79 = vector.load %arg6[%c0_26, %c0_27, %c16] : memref<1x8x32xf32, #tpu.memory_space<vmem>>, vector<1x8x8xf32>
    %80 = vector.shape_cast %79 : vector<1x8x8xf32> to vector<8x8xf32>
    %81 = vector.shape_cast %78 : vector<8x8xf32> to vector<1x8x8xf32>
    tpu.vector_store %arg6[%c0_26, %c0_27, %c16], %81 {strides = array<i32>} : memref<1x8x32xf32, #tpu.memory_space<vmem>>, vector<1x8x8xf32>,
    %82 = vector.extract_strided_slice %12 {offsets = [0, 24], sizes = [8, 8], strides = [1, 1]} : vector<8x32xbf16> to vector<8x8xbf16>
    %83 = vector.extract_strided_slice %14 {offsets = [0, 24], sizes = [8, 8], strides = [1, 1]} : vector<8x32xbf16> to vector<8x8xbf16>
    %84 = vector.extract_strided_slice %16 {offsets = [0, 24], sizes = [8, 8], strides = [1, 1]} : vector<8x32xbf16> to vector<8x8xbf16>
    %cst_28 = arith.constant dense<0.000000e+00> : vector<8x8xf32>
    %85 = tpu.matmul %82, %83, %cst_28 {dimension_numbers = #tpu.dot_dimension_numbers<[1], [1], [0], [0], [0, 0, 1, 0], [], []>} : vector<8x8xbf16>, vector<8x8xbf16>, vector<8x8xf32> -> vector<8x8xf32>
    %86 = vector.broadcast %18 : vector<1x8xf32> to vector<8x8xf32>
    %87 = arith.addf %85, %86 : vector<8x8xf32>
    %cst_29 = arith.constant dense<0xFF800000> : vector<8xf32>
    %88 = vector.multi_reduction <maximumf>, %87, %cst_29 [1] : vector<8x8xf32> to vector<8xf32>
    %89 = vector.shape_cast %88 : vector<8xf32> to vector<8x1xf32>
    %90 = vector.broadcast %89 : vector<8x1xf32> to vector<8x8xf32>
    %91 = arith.subf %87, %90 : vector<8x8xf32>
    %92 = math.exp %91 : vector<8x8xf32>
    %cst_30 = arith.constant dense<0.000000e+00> : vector<8xf32>
    %93 = vector.multi_reduction <add>, %92, %cst_30 [1] : vector<8x8xf32> to vector<8xf32>
    %94 = vector.shape_cast %93 : vector<8xf32> to vector<8x1xf32>
    %95 = arith.truncf %92 : vector<8x8xf32> to vector<8x8xbf16>
    %cst_31 = arith.constant dense<0.000000e+00> : vector<8x8xf32>
    %96 = tpu.matmul %95, %84, %cst_31 {dimension_numbers = #tpu.dot_dimension_numbers<[1], [0], [0], [1], [0, 0, 1, 1], [], []>} : vector<8x8xbf16>, vector<8x8xbf16>, vector<8x8xf32> -> vector<8x8xf32>
    %97 = tpu.reciprocal %94 {approx = true} : vector<8x1xf32> -> vector<8x1xf32>
    %98 = vector.broadcast %97 : vector<8x1xf32> to vector<8x8xf32>
    %99 = arith.mulf %96, %98 : vector<8x8xf32>
    %c0_32 = arith.constant 0 : index
    %c0_33 = arith.constant 0 : index
    %c24 = arith.constant 24 : index
    %100 = vector.load %arg6[%c0_32, %c0_33, %c24] : memref<1x8x32xf32, #tpu.memory_space<vmem>>, vector<1x8x8xf32>
    %101 = vector.shape_cast %100 : vector<1x8x8xf32> to vector<8x8xf32>
    %102 = vector.shape_cast %99 : vector<8x8xf32> to vector<1x8x8xf32>
    tpu.vector_store %arg6[%c0_32, %c0_33, %c24], %102 {strides = array<i32>} : memref<1x8x32xf32, #tpu.memory_space<vmem>>, vector<1x8x8xf32>,
    return
  }
  func.func @transform_0(%arg0: i32, %arg1: i32) -> (i32, i32, i32) {
    %c0_i32 = arith.constant 0 : i32
    %c0_i32_0 = arith.constant 0 : i32
    %c0_i32_1 = arith.constant 0 : i32
    return %arg0, %c0_i32, %c0_i32_0 : i32, i32, i32
  }
  func.func @transform_1(%arg0: i32, %arg1: i32) -> (i32, i32, i32) {
    %c0_i32 = arith.constant 0 : i32
    %c0_i32_0 = arith.constant 0 : i32
    %c0_i32_1 = arith.constant 0 : i32
    %c0_i32_2 = arith.constant 0 : i32
    return %c0_i32, %c0_i32_0, %c0_i32_1 : i32, i32, i32
  }
  func.func @transform_2(%arg0: i32, %arg1: i32) -> (i32, i32, i32) {
    %c0_i32 = arith.constant 0 : i32
    %c0_i32_0 = arith.constant 0 : i32
    %c0_i32_1 = arith.constant 0 : i32
    %c0_i32_2 = arith.constant 0 : i32
    return %c0_i32, %c0_i32_0, %c0_i32_1 : i32, i32, i32
  }
  func.func @transform_3(%arg0: i32, %arg1: i32) -> (i32, i32, i32) {
    %c0_i32 = arith.constant 0 : i32
    %c0_i32_0 = arith.constant 0 : i32
    %c0_i32_1 = arith.constant 0 : i32
    return %arg0, %c0_i32, %c0_i32_0 : i32, i32, i32
  }
  func.func @transform_4(%arg0: i32, %arg1: i32) -> (i32, i32, i32) {
    %c0_i32 = arith.constant 0 : i32
    %c0_i32_0 = arith.constant 0 : i32
    return %arg0, %c0_i32, %arg1 : i32, i32, i32
  }
}

module attributes {stable_mosaic.version = 11 : i64} {
  func.func @_attn_kernel(%arg0: i32, %arg1: i32, %arg2: memref<1x8x32xbf16, #tpu.memory_space<vmem>>, %arg3: memref<1x32x96xbf16, #tpu.memory_space<vmem>>, %arg4: memref<1x1x96xf32, #tpu.memory_space<vmem>>, %arg5: memref<1x1x8xf32, #tpu.memory_space<vmem>>, %arg6: memref<1x8x32xf32, #tpu.memory_space<vmem>>) attributes {dimension_semantics = [#tpu.dimension_semantics<parallel>, #tpu.dimension_semantics<parallel>], iteration_bounds = array<i64: 2, 1>, scalar_prefetch = 0 : i64, scratch_operands = 0 : i64, tpu.core_type = #tpu.core_type<tc>, window_params = [{transform_indices = @transform_0, window_bounds = array<i64: 1, 8, 32>}, {pipeline_mode = #tpu.pipeline_mode<synchronous>, transform_indices = @transform_1, window_bounds = array<i64: 1, 32, 96>}, {pipeline_mode = #tpu.pipeline_mode<synchronous>, transform_indices = @transform_2, window_bounds = array<i64: 1, 1, 96>}, {transform_indices = @transform_3, window_bounds = array<i64: 1, 1, 8>}, {transform_indices = @transform_4, window_bounds = array<i64: 1, 8, 32>}]} {
    %c0 = arith.constant 0 : index
    %c0_0 = arith.constant 0 : index
    %c0_1 = arith.constant 0 : index
    %0 = vector.load %arg2[%c0, %c0_0, %c0_1] : memref<1x8x32xbf16, #tpu.memory_space<vmem>>, vector<1x8x32xbf16>
    %1 = vector.shape_cast %0 : vector<1x8x32xbf16> to vector<8x32xbf16>
    %2 = arith.index_cast %arg1 : i32 to index
    %c0_2 = arith.constant 0 : index
    %c0_3 = arith.constant 0 : index
    %3 = vector.load %arg3[%2, %c0_2, %c0_3] : memref<1x32x96xbf16, #tpu.memory_space<vmem>>, vector<1x32x96xbf16>
    %4 = vector.shape_cast %3 : vector<1x32x96xbf16> to vector<32x96xbf16>
    %5 = arith.index_cast %arg1 : i32 to index
    %c0_4 = arith.constant 0 : index
    %c0_5 = arith.constant 0 : index
    %6 = vector.load %arg4[%5, %c0_4, %c0_5] : memref<1x1x96xf32, #tpu.memory_space<vmem>>, vector<1x1x96xf32>
    %7 = vector.shape_cast %6 : vector<1x1x96xf32> to vector<1x96xf32>
    %cst = arith.constant dense<0.000000e+00> : vector<8x96xf32>
    %8 = tpu.matmul %1, %4, %cst {dimension_numbers = #tpu.dot_dimension_numbers<[1], [0], [0], [1], [0, 0, 1, 1], [], []>} : vector<8x32xbf16>, vector<32x96xbf16>, vector<8x96xf32> -> vector<8x96xf32>
    %9 = vector.broadcast %7 : vector<1x96xf32> to vector<8x96xf32>
    %10 = arith.addf %8, %9 : vector<8x96xf32>
    %11 = vector.extract_strided_slice %10 {offsets = [0, 0], sizes = [8, 32], strides = [1, 1]} : vector<8x96xf32> to vector<8x32xf32>
    %12 = arith.truncf %11 : vector<8x32xf32> to vector<8x32xbf16>
    %13 = vector.extract_strided_slice %10 {offsets = [0, 32], sizes = [8, 32], strides = [1, 1]} : vector<8x96xf32> to vector<8x32xf32>
    %14 = arith.truncf %13 : vector<8x32xf32> to vector<8x32xbf16>
    %15 = vector.extract_strided_slice %10 {offsets = [0, 64], sizes = [8, 32], strides = [1, 1]} : vector<8x96xf32> to vector<8x32xf32>
    %16 = arith.truncf %15 : vector<8x32xf32> to vector<8x32xbf16>
    %c0_6 = arith.constant 0 : index
    %c0_7 = arith.constant 0 : index
    %c0_8 = arith.constant 0 : index
    %17 = vector.load %arg5[%c0_6, %c0_7, %c0_8] : memref<1x1x8xf32, #tpu.memory_space<vmem>>, vector<1x1x8xf32>
    %18 = vector.shape_cast %17 : vector<1x1x8xf32> to vector<1x8xf32>
    %19 = vector.extract_strided_slice %12 {offsets = [0, 0], sizes = [8, 8], strides = [1, 1]} : vector<8x32xbf16> to vector<8x8xbf16>
    %20 = vector.extract_strided_slice %14 {offsets = [0, 0], sizes = [8, 8], strides = [1, 1]} : vector<8x32xbf16> to vector<8x8xbf16>
    %21 = vector.extract_strided_slice %16 {offsets = [0, 0], sizes = [8, 8], strides = [1, 1]} : vector<8x32xbf16> to vector<8x8xbf16>
    %cst_9 = arith.constant dense<0.000000e+00> : vector<8x8xf32>
    %22 = tpu.matmul %19, %20, %cst_9 {dimension_numbers = #tpu.dot_dimension_numbers<[1], [1], [0], [0], [0, 0, 1, 0], [], []>} : vector<8x8xbf16>, vector<8x8xbf16>, vector<8x8xf32> -> vector<8x8xf32>
    %23 = vector.broadcast %18 : vector<1x8xf32> to vector<8x8xf32>
    %24 = arith.addf %22, %23 : vector<8x8xf32>
    %cst_10 = arith.constant dense<0xFF800000> : vector<8xf32>
    %25 = vector.multi_reduction <maximumf>, %24, %cst_10 [1] : vector<8x8xf32> to vector<8xf32>
    %26 = vector.shape_cast %25 : vector<8xf32> to vector<8x1xf32>
    %27 = vector.broadcast %26 : vector<8x1xf32> to vector<8x8xf32>
    %28 = arith.subf %24, %27 : vector<8x8xf32>
    %29 = math.exp %28 : vector<8x8xf32>
    %cst_11 = arith.constant dense<0.000000e+00> : vector<8xf32>
    %30 = vector.multi_reduction <add>, %29, %cst_11 [1] : vector<8x8xf32> to vector<8xf32>
    %31 = vector.shape_cast %30 : vector<8xf32> to vector<8x1xf32>
    %32 = arith.truncf %29 : vector<8x8xf32> to vector<8x8xbf16>
    %cst_12 = arith.constant dense<0.000000e+00> : vector<8x8xf32>
    %33 = tpu.matmul %32, %21, %cst_12 {dimension_numbers = #tpu.dot_dimension_numbers<[1], [0], [0], [1], [0, 0, 1, 1], [], []>} : vector<8x8xbf16>, vector<8x8xbf16>, vector<8x8xf32> -> vector<8x8xf32>
    %34 = tpu.reciprocal %31 {approx = true} : vector<8x1xf32> -> vector<8x1xf32>
    %35 = vector.broadcast %34 : vector<8x1xf32> to vector<8x8xf32>
    %36 = arith.mulf %33, %35 : vector<8x8xf32>
    %c0_13 = arith.constant 0 : index
    %c0_14 = arith.constant 0 : index
    %c0_15 = arith.constant 0 : index
    %37 = vector.load %arg6[%c0_13, %c0_14, %c0_15] : memref<1x8x32xf32, #tpu.memory_space<vmem>>, vector<1x8x8xf32>
    %38 = vector.shape_cast %37 : vector<1x8x8xf32> to vector<8x8xf32>
    %39 = vector.shape_cast %36 : vector<8x8xf32> to vector<1x8x8xf32>
    tpu.vector_store %arg6[%c0_13, %c0_14, %c0_15], %39 {strides = array<i32>} : memref<1x8x32xf32, #tpu.memory_space<vmem>>, vector<1x8x8xf32>,
    %40 = vector.extract_strided_slice %12 {offsets = [0, 8], sizes = [8, 8], strides = [1, 1]} : vector<8x32xbf16> to vector<8x8xbf16>
    %41 = vector.extract_strided_slice %14 {offsets = [0, 8], sizes = [8, 8], strides = [1, 1]} : vector<8x32xbf16> to vector<8x8xbf16>
    %42 = vector.extract_strided_slice %16 {offsets = [0, 8], sizes = [8, 8], strides = [1, 1]} : vector<8x32xbf16> to vector<8x8xbf16>
    %cst_16 = arith.constant dense<0.000000e+00> : vector<8x8xf32>
    %43 = tpu.matmul %40, %41, %cst_16 {dimension_numbers = #tpu.dot_dimension_numbers<[1], [1], [0], [0], [0, 0, 1, 0], [], []>} : vector<8x8xbf16>, vector<8x8xbf16>, vector<8x8xf32> -> vector<8x8xf32>
    %44 = vector.broadcast %18 : vector<1x8xf32> to vector<8x8xf32>
    %45 = arith.addf %43, %44 : vector<8x8xf32>
    %cst_17 = arith.constant dense<0xFF800000> : vector<8xf32>
    %46 = vector.multi_reduction <maximumf>, %45, %cst_17 [1] : vector<8x8xf32> to vector<8xf32>
    %47 = vector.shape_cast %46 : vector<8xf32> to vector<8x1xf32>
    %48 = vector.broadcast %47 : vector<8x1xf32> to vector<8x8xf32>
    %49 = arith.subf %45, %48 : vector<8x8xf32>
    %50 = math.exp %49 : vector<8x8xf32>
    %cst_18 = arith.constant dense<0.000000e+00> : vector<8xf32>
    %51 = vector.multi_reduction <add>, %50, %cst_18 [1] : vector<8x8xf32> to vector<8xf32>
    %52 = vector.shape_cast %51 : vector<8xf32> to vector<8x1xf32>
    %53 = arith.truncf %50 : vector<8x8xf32> to vector<8x8xbf16>
    %cst_19 = arith.constant dense<0.000000e+00> : vector<8x8xf32>
    %54 = tpu.matmul %53, %42, %cst_19 {dimension_numbers = #tpu.dot_dimension_numbers<[1], [0], [0], [1], [0, 0, 1, 1], [], []>} : vector<8x8xbf16>, vector<8x8xbf16>, vector<8x8xf32> -> vector<8x8xf32>
    %55 = tpu.reciprocal %52 {approx = true} : vector<8x1xf32> -> vector<8x1xf32>
    %56 = vector.broadcast %55 : vector<8x1xf32> to vector<8x8xf32>
    %57 = arith.mulf %54, %56 : vector<8x8xf32>
    %c0_20 = arith.constant 0 : index
    %c0_21 = arith.constant 0 : index
    %c8 = arith.constant 8 : index
    %58 = vector.load %arg6[%c0_20, %c0_21, %c8] : memref<1x8x32xf32, #tpu.memory_space<vmem>>, vector<1x8x8xf32>
    %59 = vector.shape_cast %58 : vector<1x8x8xf32> to vector<8x8xf32>
    %60 = vector.shape_cast %57 : vector<8x8xf32> to vector<1x8x8xf32>
    tpu.vector_store %arg6[%c0_20, %c0_21, %c8], %60 {strides = array<i32>} : memref<1x8x32xf32, #tpu.memory_space<vmem>>, vector<1x8x8xf32>,
    %61 = vector.extract_strided_slice %12 {offsets = [0, 16], sizes = [8, 8], strides = [1, 1]} : vector<8x32xbf16> to vector<8x8xbf16>
    %62 = vector.extract_strided_slice %14 {offsets = [0, 16], sizes = [8, 8], strides = [1, 1]} : vector<8x32xbf16> to vector<8x8xbf16>
    %63 = vector.extract_strided_slice %16 {offsets = [0, 16], sizes = [8, 8], strides = [1, 1]} : vector<8x32xbf16> to vector<8x8xbf16>
    %cst_22 = arith.constant dense<0.000000e+00> : vector<8x8xf32>
    %64 = tpu.matmul %61, %62, %cst_22 {dimension_numbers = #tpu.dot_dimension_numbers<[1], [1], [0], [0], [0, 0, 1, 0], [], []>} : vector<8x8xbf16>, vector<8x8xbf16>, vector<8x8xf32> -> vector<8x8xf32>
    %65 = vector.broadcast %18 : vector<1x8xf32> to vector<8x8xf32>
    %66 = arith.addf %64, %65 : vector<8x8xf32>
    %cst_23 = arith.constant dense<0xFF800000> : vector<8xf32>
    %67 = vector.multi_reduction <maximumf>, %66, %cst_23 [1] : vector<8x8xf32> to vector<8xf32>
    %68 = vector.shape_cast %67 : vector<8xf32> to vector<8x1xf32>
    %69 = vector.broadcast %68 : vector<8x1xf32> to vector<8x8xf32>
    %70 = arith.subf %66, %69 : vector<8x8xf32>
    %71 = math.exp %70 : vector<8x8xf32>
    %cst_24 = arith.constant dense<0.000000e+00> : vector<8xf32>
    %72 = vector.multi_reduction <add>, %71, %cst_24 [1] : vector<8x8xf32> to vector<8xf32>
    %73 = vector.shape_cast %72 : vector<8xf32> to vector<8x1xf32>
    %74 = arith.truncf %71 : vector<8x8xf32> to vector<8x8xbf16>
    %cst_25 = arith.constant dense<0.000000e+00> : vector<8x8xf32>
    %75 = tpu.matmul %74, %63, %cst_25 {dimension_numbers = #tpu.dot_dimension_numbers<[1], [0], [0], [1], [0, 0, 1, 1], [], []>} : vector<8x8xbf16>, vector<8x8xbf16>, vector<8x8xf32> -> vector<8x8xf32>
    %76 = tpu.reciprocal %73 {approx = true} : vector<8x1xf32> -> vector<8x1xf32>
    %77 = vector.broadcast %76 : vector<8x1xf32> to vector<8x8xf32>
    %78 = arith.mulf %75, %77 : vector<8x8xf32>
    %c0_26 = arith.constant 0 : index
    %c0_27 = arith.constant 0 : index
    %c16 = arith.constant 16 : index
    %79 = vector.load %arg6[%c0_26, %c0_27, %c16] : memref<1x8x32xf32, #tpu.memory_space<vmem>>, vector<1x8x8xf32>
    %80 = vector.shape_cast %79 : vector<1x8x8xf32> to vector<8x8xf32>
    %81 = vector.shape_cast %78 : vector<8x8xf32> to vector<1x8x8xf32>
    tpu.vector_store %arg6[%c0_26, %c0_27, %c16], %81 {strides = array<i32>} : memref<1x8x32xf32, #tpu.memory_space<vmem>>, vector<1x8x8xf32>,
    %82 = vector.extract_strided_slice %12 {offsets = [0, 24], sizes = [8, 8], strides = [1, 1]} : vector<8x32xbf16> to vector<8x8xbf16>
    %83 = vector.extract_strided_slice %14 {offsets = [0, 24], sizes = [8, 8], strides = [1, 1]} : vector<8x32xbf16> to vector<8x8xbf16>
    %84 = vector.extract_strided_slice %16 {offsets = [0, 24], sizes = [8, 8], strides = [1, 1]} : vector<8x32xbf16> to vector<8x8xbf16>
    %cst_28 = arith.constant dense<0.000000e+00> : vector<8x8xf32>
    %85 = tpu.matmul %82, %83, %cst_28 {dimension_numbers = #tpu.dot_dimension_numbers<[1], [1], [0], [0], [0, 0, 1, 0], [], []>} : vector<8x8xbf16>, vector<8x8xbf16>, vector<8x8xf32> -> vector<8x8xf32>
    %86 = vector.broadcast %18 : vector<1x8xf32> to vector<8x8xf32>
    %87 = arith.addf %85, %86 : vector<8x8xf32>
    %cst_29 = arith.constant dense<0xFF800000> : vector<8xf32>
    %88 = vector.multi_reduction <maximumf>, %87, %cst_29 [1] : vector<8x8xf32> to vector<8xf32>
    %89 = vector.shape_cast %88 : vector<8xf32> to vector<8x1xf32>
    %90 = vector.broadcast %89 : vector<8x1xf32> to vector<8x8xf32>
    %91 = arith.subf %87, %90 : vector<8x8xf32>
    %92 = math.exp %91 : vector<8x8xf32>
    %cst_30 = arith.constant dense<0.000000e+00> : vector<8xf32>
    %93 = vector.multi_reduction <add>, %92, %cst_30 [1] : vector<8x8xf32> to vector<8xf32>
    %94 = vector.shape_cast %93 : vector<8xf32> to vector<8x1xf32>
    %95 = arith.truncf %92 : vector<8x8xf32> to vector<8x8xbf16>
    %cst_31 = arith.constant dense<0.000000e+00> : vector<8x8xf32>
    %96 = tpu.matmul %95, %84, %cst_31 {dimension_numbers = #tpu.dot_dimension_numbers<[1], [0], [0], [1], [0, 0, 1, 1], [], []>} : vector<8x8xbf16>, vector<8x8xbf16>, vector<8x8xf32> -> vector<8x8xf32>
    %97 = tpu.reciprocal %94 {approx = true} : vector<8x1xf32> -> vector<8x1xf32>
    %98 = vector.broadcast %97 : vector<8x1xf32> to vector<8x8xf32>
    %99 = arith.mulf %96, %98 : vector<8x8xf32>
    %c0_32 = arith.constant 0 : index
    %c0_33 = arith.constant 0 : index
    %c24 = arith.constant 24 : index
    %100 = vector.load %arg6[%c0_32, %c0_33, %c24] : memref<1x8x32xf32, #tpu.memory_space<vmem>>, vector<1x8x8xf32>
    %101 = vector.shape_cast %100 : vector<1x8x8xf32> to vector<8x8xf32>
    %102 = vector.shape_cast %99 : vector<8x8xf32> to vector<1x8x8xf32>
    tpu.vector_store %arg6[%c0_32, %c0_33, %c24], %102 {strides = array<i32>} : memref<1x8x32xf32, #tpu.memory_space<vmem>>, vector<1x8x8xf32>,
    return
  }
  func.func @transform_0(%arg0: i32, %arg1: i32) -> (i32, i32, i32) {
    %c0_i32 = arith.constant 0 : i32
    %c0_i32_0 = arith.constant 0 : i32
    %c0_i32_1 = arith.constant 0 : i32
    return %arg0, %c0_i32, %c0_i32_0 : i32, i32, i32
  }
  func.func @transform_1(%arg0: i32, %arg1: i32) -> (i32, i32, i32) {
    %c0_i32 = arith.constant 0 : i32
    %c0_i32_0 = arith.constant 0 : i32
    %c0_i32_1 = arith.constant 0 : i32
    %c0_i32_2 = arith.constant 0 : i32
    return %c0_i32, %c0_i32_0, %c0_i32_1 : i32, i32, i32
  }
  func.func @transform_2(%arg0: i32, %arg1: i32) -> (i32, i32, i32) {
    %c0_i32 = arith.constant 0 : i32
    %c0_i32_0 = arith.constant 0 : i32
    %c0_i32_1 = arith.constant 0 : i32
    %c0_i32_2 = arith.constant 0 : i32
    return %c0_i32, %c0_i32_0, %c0_i32_1 : i32, i32, i32
  }
  func.func @transform_3(%arg0: i32, %arg1: i32) -> (i32, i32, i32) {
    %c0_i32 = arith.constant 0 : i32
    %c0_i32_0 = arith.constant 0 : i32
    %c0_i32_1 = arith.constant 0 : i32
    return %arg0, %c0_i32, %c0_i32_0 : i32, i32, i32
  }
  func.func @transform_4(%arg0: i32, %arg1: i32) -> (i32, i32, i32) {
    %c0_i32 = arith.constant 0 : i32
    %c0_i32_0 = arith.constant 0 : i32
    return %arg0, %c0_i32, %arg1 : i32, i32, i32
  }
}

</mosaic_0001>

<llo_original>
// kernel: tpu_custom_call.1
$region0: #{tpu_custom_call.1}
  #allocation0 [shape = 'u32[]', space=smem, size = 0x4, offset = 0x4, fixed_abs, tag = 'smem constant byte address 0x4 - core index']
  #allocation1 [shape = 'u32[72,128]{1,0:T(1,128)}', space=vmem, size = 0x9000, scoped, tag = 'internal scratch']
  %s0 = inlined_call_operand.hbm [shape: bf16[2,8,32], index: 0, kind: input, shape index: {}]
  %s1 = inlined_call_operand.hbm [shape: bf16[1,32,96], index: 1, kind: input, shape index: {}]
  %s2 = inlined_call_operand.hbm [shape: f32[1,1,96], index: 2, kind: input, shape index: {}]
  %s3 = inlined_call_operand.vmem [shape: f32[2,1,8], index: 3, kind: input, shape index: {}]
  %s4 = inlined_call_operand.hbm [shape: f32[2,8,32], index: 4, kind: output, shape index: {}]
  %s5 = sld [smem:[#allocation0]]
  $region61: #{tpu_custom_call.1} parent=0
    _
  %s7 = ssub.s32 1, %s5
  %s8 = scalar_select 0, %s7, %s5
  $region1: #{tpu_custom_call.1} parent=0
    #allocation2 [shape = 'u8[4096]{0}', space=vmem, size = 0x1000, scoped, tag = 'input window, operand 0']
    #allocation3 [shape = 's32[2]{0}', space=sflag, size = 0x8, scoped, tag = 'scoped memory for tpu_custom_call.1']
    #allocation4 [shape = 's32[2]{0}', space=sflag, size = 0x8, scoped, tag = 'scoped memory for tpu_custom_call.1']
    #allocation5 [shape = 'u8[8192]{0}', space=vmem, size = 0x2000, scoped, tag = 'input window, operand 1, single buffered']
    #allocation6 [shape = 's32[1]{0}', space=sflag, size = 0x4, scoped, tag = 'scoped memory for tpu_custom_call.1']
    #allocation7 [shape = 'u8[512]{0}', space=vmem, size = 0x400, scoped, tag = 'input window, operand 2, single buffered']
    #allocation8 [shape = 'u8[8192]{0}', space=vmem, size = 0x2000, scoped, tag = 'output window, operand 0']
    %9 = vsyncpa [#allocation3], 0
    %s10 = scalar_lea.sflag [#allocation3], 1
    %11 = vsyncpa %s10, 0
    %12 = vsyncpa [#allocation6], 0
    %13 = vsyncpa [#allocation4], 0
    %s14 = scalar_lea.sflag [#allocation4], 1
    %15 = vsyncpa %s14, 0
    loop: start=0, step=1, limit=4
    $region2: #{tpu_custom_call.1} parent=1 // loop_pre_header
      _
    $region3: #{tpu_custom_call.1} parent=1 // loop_header
      %s17 = sphi 0, %s21
      %p18 = scmp.ge.s32.totalorder %s17, 4
      %s24 = sphi 0, %s36
      %s25 = sphi 0, %s32
      %s26 = sphi 0, %s24
      %s27 = sphi 0, %s25
      %s28 = sphi 0, %s26
      %s29 = sphi 0, %s27
      %s39 = sphi 0, %s41
      %s42 = sphi 0, %s39
      %s43 = sphi 0, %s42
      %s59 = sphi 0, %s43
      %s63 = sphi 0, %s63
      %s65 = sphi 0, %s63
      %s66 = sphi 0, %s65
      %s80 = sphi 0, %s66
      %s84 = sphi 0, %s84
      %s86 = sphi 0, %s84
      %s87 = sphi 0, %s86
      %s101 = sphi 0, %s87
      %s107 = sphi 0, %s109
      %s110 = sphi 0, %s107
      %s111 = sphi 0, %s110
      %s127 = sphi 0, %s111
      %s135 = sphi 0, %s137
      %s138 = sphi 0, %s135
      %s139 = sphi 0, %s138
      %s155 = sphi 0, %s139
    $region4: #{tpu_custom_call.1} parent=1 // loop_header_branch
      %20 = sbr.rel (%p18) target = $region8
    $region5: #{tpu_custom_call.1} parent=1 // loop_body
      %s22 = ssub.s32 %s17, 1
      %s23 = ssub.s32 %s17, 2
      %s30 = sadd.s32 1, %s25
      %p31 = scmp.ge.s32.totalorder %s30, 1
      %s32 = scalar_select %p31, 0, %s30
      %s33 = sadd.s32 1, %s24
      %s34 = scalar_select %p31, %s33, %s24
      %p35 = scmp.ge.s32.totalorder %s34, 2
      %s36 = scalar_select %p35, 0, %s34
      %s37 = ssub.s32 %s24, %s36
      %p38 = scmp.eq.s32.totalorder %s37, 0
      %s40 = sadd.s32 %s39, 1
      %s41 = scalar_select %p38, %s39, %s40
      %p44 = pneg %p38
      %p45 = scmp.eq.s32.totalorder %s17, 1
      %p46 = por %p44, %p45
      %p47 = scmp.ne.s32.totalorder %s39, %s42
      %p48 = scmp.eq.s32.totalorder %s17, 0
      %p49 = por %p47, %p48
      %p50 = scmp.ne.s32.totalorder %s39, %s42
      %p51 = scmp.eq.s32.totalorder %s22, 1
      %p52 = por %p50, %p51
      %p53 = scmp.ne.s32.totalorder %s42, %s43
      %p54 = scmp.eq.s32.totalorder %s22, 0
      %p55 = por %p53, %p54
      %p56 = scmp.ne.s32.totalorder %s42, %s43
      %p57 = scmp.eq.s32.totalorder %s23, 1
      %p58 = por %p56, %p57
      %p60 = scmp.ne.s32.totalorder %s43, %s59
      %p61 = scmp.eq.s32.totalorder %s23, 0
      %p62 = por %p60, %p61
      %s64 = sadd.s32 %s63, 1
      %p67 = scmp.eq.s32.totalorder %s17, 1
      %p68 = scmp.ne.s32.totalorder %s63, %s65
      %p69 = scmp.eq.s32.totalorder %s17, 0
      %p70 = por %p68, %p69
      %p71 = scmp.ne.s32.totalorder %s63, %s65
      %p72 = scmp.eq.s32.totalorder %s22, 1
      %p73 = por %p71, %p72
      %p74 = scmp.ne.s32.totalorder %s65, %s66
      %p75 = scmp.eq.s32.totalorder %s22, 0
      %p76 = por %p74, %p75
      %p77 = scmp.ne.s32.totalorder %s65, %s66
      %p78 = scmp.eq.s32.totalorder %s23, 1
      %p79 = por %p77, %p78
      %p81 = scmp.ne.s32.totalorder %s66, %s80
      %p82 = scmp.eq.s32.totalorder %s23, 0
      %p83 = por %p81, %p82
      %s85 = sadd.s32 %s84, 1
      %p88 = scmp.eq.s32.totalorder %s17, 1
      %p89 = scmp.ne.s32.totalorder %s84, %s86
      %p90 = scmp.eq.s32.totalorder %s17, 0
      %p91 = por %p89, %p90
      %p92 = scmp.ne.s32.totalorder %s84, %s86
      %p93 = scmp.eq.s32.totalorder %s22, 1
      %p94 = por %p92, %p93
      %p95 = scmp.ne.s32.totalorder %s86, %s87
      %p96 = scmp.eq.s32.totalorder %s22, 0
      %p97 = por %p95, %p96
      %p98 = scmp.ne.s32.totalorder %s86, %s87
      %p99 = scmp.eq.s32.totalorder %s23, 1
      %p100 = por %p98, %p99
      %p102 = scmp.ne.s32.totalorder %s87, %s101
      %p103 = scmp.eq.s32.totalorder %s23, 0
      %p104 = por %p102, %p103
      %s105 = ssub.s32 %s24, %s36
      %p106 = scmp.eq.s32.totalorder %s105, 0
      %s108 = sadd.s32 %s107, 1
      %s109 = scalar_select %p106, %s107, %s108
      %p112 = pneg %p106
      %p113 = scmp.eq.s32.totalorder %s17, 1
      %p114 = por %p112, %p113
      %p115 = scmp.ne.s32.totalorder %s107, %s110
      %p116 = scmp.eq.s32.totalorder %s17, 0
      %p117 = por %p115, %p116
      %p118 = scmp.ne.s32.totalorder %s107, %s110
      %p119 = scmp.eq.s32.totalorder %s22, 1
      %p120 = por %p118, %p119
      %p121 = scmp.ne.s32.totalorder %s110, %s111
      %p122 = scmp.eq.s32.totalorder %s22, 0
      %p123 = por %p121, %p122
      %p124 = scmp.ne.s32.totalorder %s110, %s111
      %p125 = scmp.eq.s32.totalorder %s23, 1
      %p126 = por %p124, %p125
      %p128 = scmp.ne.s32.totalorder %s111, %s127
      %p129 = scmp.eq.s32.totalorder %s23, 0
      %p130 = por %p128, %p129
      %s131 = ssub.s32 %s24, %s36
      %s132 = ssub.s32 %s25, %s32
      %s133 = sor.u32 %s131, %s132
      %p134 = scmp.eq.s32.totalorder %s133, 0
      %s136 = sadd.s32 %s135, 1
      %s137 = scalar_select %p134, %s135, %s136
      %p140 = pneg %p134
      %p141 = scmp.eq.s32.totalorder %s17, 1
      %p142 = por %p140, %p141
      %p143 = scmp.ne.s32.totalorder %s135, %s138
      %p144 = scmp.eq.s32.totalorder %s17, 0
      %p145 = por %p143, %p144
      %p146 = scmp.ne.s32.totalorder %s135, %s138
      %p147 = scmp.eq.s32.totalorder %s22, 1
      %p148 = por %p146, %p147
      %p149 = scmp.ne.s32.totalorder %s138, %s139
      %p150 = scmp.eq.s32.totalorder %s22, 0
      %p151 = por %p149, %p150
      %p152 = scmp.ne.s32.totalorder %s138, %s139
      %p153 = scmp.eq.s32.totalorder %s23, 1
      %p154 = por %p152, %p153
      %p156 = scmp.ne.s32.totalorder %s139, %s155
      %p157 = scmp.eq.s32.totalorder %s23, 0
      %p158 = por %p156, %p157
      %p159 = scmp.le.s32.totalorder 1, %s17
      %p160 = scmp.lt.s32.totalorder %s17, 3
      %p161 = pnand %p159, %p160
      %p162 = pneg %p161
      // Predicated region
      $region9: #{tpu_custom_call.1} parent=5 // pred_check
        _
      $region10: #{tpu_custom_call.1} parent=5 // pred_check_branch
        %164 = sbr.rel (%p161) target = $region12
      $region11: #{tpu_custom_call.1} parent=5 // pred_region
        %s165 = ssub.s32 %s17, 1
        // Predicated region
        $region13: #{tpu_custom_call.1} parent=11 // pred_check
          %p166 = pneg %p76
        $region14: #{tpu_custom_call.1} parent=11 // pred_check_branch
          %168 = sbr.rel (%p166) target = $region16
        $region15: #{tpu_custom_call.1} parent=11 // pred_region
          %170 = vsyncadd [#allocation6], 0
          %s171 = sshll.u32 %s1, 4
          %s172 = int_to_ptr.hbm [resolvable:$true] %s171
          %s173 = sshll.u32 [#allocation5], 4
          %s174 = int_to_ptr.vmem [resolvable:$true] %s173
          %179 = dma.hbm_to_vmem [thread:$0]  %s172, 256, %s174, [#allocation6], 64, 64, 4
        $region16: #{tpu_custom_call.1} parent=11 // pred_fallthru
          _
        // Predicated region
        $region17: #{tpu_custom_call.1} parent=11 // pred_check
          %p180 = pneg %p97
        $region18: #{tpu_custom_call.1} parent=11 // pred_check_branch
          %182 = sbr.rel (%p180) target = $region20
        $region19: #{tpu_custom_call.1} parent=11 // pred_region
          %184 = vsyncadd [#allocation6], 0
          %s186 = sshll.u32 %s2, 4
          %s187 = int_to_ptr.hbm [resolvable:$true] %s186
          %s188 = sshll.u32 [#allocation7], 4
          %s189 = int_to_ptr.vmem [resolvable:$true] %s188
          %191 = dma.hbm_to_vmem [thread:$0]  %s187, 16, %s189, [#allocation6]
        $region20: #{tpu_custom_call.1} parent=11 // pred_fallthru
          _
      $region12: #{tpu_custom_call.1} parent=5 // pred_fallthru
        _
      %p192 = scmp.lt.s32.totalorder %s17, 2
      // Predicated region
      $region21: #{tpu_custom_call.1} parent=5 // pred_check
        %p193 = pneg %p192
      $region22: #{tpu_custom_call.1} parent=5 // pred_check_branch
        %195 = sbr.rel (%p193) target = $region24
      $region23: #{tpu_custom_call.1} parent=5 // pred_region
        // Predicated region
        $region25: #{tpu_custom_call.1} parent=23 // pred_check
          %p196 = pneg %p49
        $region26: #{tpu_custom_call.1} parent=23 // pred_check_branch
          %198 = sbr.rel (%p196) target = $region28
        $region27: #{tpu_custom_call.1} parent=23 // pred_region
          %s199 = sand.u32 %s39, 1
          %s200 = scalar_lea.sflag [#allocation3], %s199
          %s201 = sand.u32 %s39, 1
          %s202 = smul.addr %s201, 4
          %s203 = scalar_lea.vmem [#allocation2], %s202
          %205 = vsyncadd %s200, 0
          %s206 = smul.addr %s24, 4
          %s207 = scalar_lea.hbm %s0, %s206
          %s209 = sshll.u32 %s207, 4
          %s210 = int_to_ptr.hbm [resolvable:$true] %s209
          %s211 = sshll.u32 %s203, 4
          %s212 = int_to_ptr.vmem [resolvable:$true] %s211
          %214 = dma.hbm_to_vmem [thread:$0]  %s210, 64, %s212, %s200
        $region28: #{tpu_custom_call.1} parent=23 // pred_fallthru
          _
        // Predicated region
        $region29: #{tpu_custom_call.1} parent=23 // pred_check
          %p215 = pneg %p117
        $region30: #{tpu_custom_call.1} parent=23 // pred_check_branch
          %217 = sbr.rel (%p215) target = $region32
        $region31: #{tpu_custom_call.1} parent=23 // pred_region
          %p218 = scmp.lt.s32.totalorder %s24, 1
          %s219 = scalar_select %p218, %s24, 1
          %s220 = scalar_lea.vmem %s3, %s219
        $region32: #{tpu_custom_call.1} parent=23 // pred_fallthru
          _
      $region24: #{tpu_custom_call.1} parent=5 // pred_fallthru
        _
      %p221 = scmp.le.s32.totalorder 1, %s17
      %p222 = scmp.lt.s32.totalorder %s17, 3
      %p223 = pnand %p221, %p222
      %p224 = pneg %p223
      // Predicated region
      $region33: #{tpu_custom_call.1} parent=5 // pred_check
        _
      $region34: #{tpu_custom_call.1} parent=5 // pred_check_branch
        %226 = sbr.rel (%p223) target = $region36
      $region35: #{tpu_custom_call.1} parent=5 // pred_region
        %s227 = ssub.s32 %s17, 1
        %s228 = sand.u32 %s42, 1
        %s229 = scalar_lea.sflag [#allocation3], %s228
        %s230 = sand.u32 %s42, 1
        %s231 = smul.addr %s230, 4
        %s232 = scalar_lea.vmem [#allocation2], %s231
        // Predicated region
        $region37: #{tpu_custom_call.1} parent=35 // pred_check
          %p233 = pneg %p55
        $region38: #{tpu_custom_call.1} parent=35 // pred_check_branch
          %235 = sbr.rel (%p233) target = $region40
        $region39: #{tpu_custom_call.1} parent=35 // pred_region
          %237 = dma.done %s229, 64
        $region40: #{tpu_custom_call.1} parent=35 // pred_fallthru
          _
        // Predicated region
        $region41: #{tpu_custom_call.1} parent=35 // pred_check
          %p238 = pneg %p76
        $region42: #{tpu_custom_call.1} parent=35 // pred_check_branch
          %240 = sbr.rel (%p238) target = $region44
        $region43: #{tpu_custom_call.1} parent=35 // pred_region
          %242 = dma.done [#allocation6], 256
        $region44: #{tpu_custom_call.1} parent=35 // pred_fallthru
          _
        // Predicated region
        $region45: #{tpu_custom_call.1} parent=35 // pred_check
          %p243 = pneg %p97
        $region46: #{tpu_custom_call.1} parent=35 // pred_check_branch
          %245 = sbr.rel (%p243) target = $region48
        $region47: #{tpu_custom_call.1} parent=35 // pred_region
          %247 = dma.done [#allocation6], 16
        $region48: #{tpu_custom_call.1} parent=35 // pred_fallthru
          _
        %s248 = sand.u32 %s42, 1
        %s249 = scalar_lea.sflag [#allocation3], %s248
        %s250 = sand.u32 %s42, 1
        %s251 = smul.addr %s250, 4
        %s252 = scalar_lea.vmem [#allocation2], %s251
        %p253 = pneg %p55
        %p254 = pneg %p52
        %p255 = pneg %p76
        %p256 = pneg %p73
        %p257 = pneg %p97
        %p258 = pneg %p94
        %p259 = scmp.lt.s32.totalorder %s26, 1
        %s260 = scalar_select %p259, %s26, 1
        %s261 = scalar_lea.vmem %s3, %s260
        %p262 = pneg %p123
        %p263 = pneg %p120
        %p264 = pneg %p151
        %p265 = pneg %p148
        %s266 = sand.u32 %s138, 1
        %s267 = scalar_lea.sflag [#allocation4], %s266
        %s268 = sand.u32 %s138, 1
        %s269 = smul.addr %s268, 8
        %s270 = scalar_lea.vmem [#allocation8], %s269
        %p271 = scmp.lt.s32.totalorder %s26, 1
        %s272 = scalar_select %p271, %s26, 1
        %s273 = scalar_lea.vmem %s3, %s272
        %v275 = vld [vmem:[%s232] sm:$0xf]
        %s276 = smul.u32 %s27, 4
        %s277 = smul.addr %s276, 4
        %s278 = scalar_lea.vmem [#allocation5], %s277
        %v279 = vld [vmem:[%s278] sm:$0xf]
        %v280 = vld [vmem:[%s278 + $0x4] sm:$0xf]
        %v281 = vld [vmem:[%s278 + $0x8] sm:$0xf]
        %v282 = vld [vmem:[%s278 + $0xc] sm:$0xf]
        %s283 = scalar_lea.vmem [#allocation7], %s27
        %v284 = vld [vmem:[%s283] sm:$0x1]
        %v286 = vperm.slane %v284, 0
        %v292 = vunpack.c.l.b16 %v279
        %v293 = vunpack.c.l.b16 %v280
        %v294 = vunpack.c.l.b16 %v281
        %v295 = vunpack.c.l.b16 %v282
        %v296 = vpack.c.b16 %v293, %v292
        %v297 = vpack.c.b16 %v295, %v294
        %vm300 = vcmask 261120
        %v302 = vsel %vm300, %v275, 0
        %304 = vmatpush.bf16.msra.mxu0 0
        %305 = vmatpush.bf16.msra.mxu0 0
        %306 = vmatpush.bf16.msra.mxu0 0
        %307 = vmatpush.bf16.msra.mxu0 0
        %308 = vmatpush.bf16.msra.mxu0 0
        %309 = vmatpush.bf16.msra.mxu0 0
        %310 = vmatpush.bf16.msra.mxu0 %v297
        %311 = vmatpush.bf16.msra.mxu0 %v296
        %312 = vmatmul.bf16.gmra.mxu0 %v302
        %v313 = vpop.f32.mrf.mxu0
        %v314 = vadd.f32 %v286, %v313
        %v315 = vpop.f32.mrf.mxu0
        %316 = vdwg.mxu0
        %v317 = vpack.c.bf16 %v314, %v314
        %v318 = vld [vmem:[%s273] sm:$0x1]
        %v320 = vperm.slane %v318, 0
        %v323 = vunpack.c.l.b16 %v317
        %v324 = vpack.c.b16 %v323, %v323
        %325 = vrot.lane.b32.xlu0 %v324, 96
        %v326 = vpop.permute.xlu0 %325
        %vm327 = vcmask 64512
        %v329 = vsel %vm327, %v317, 0
        %v332 = vsel %vm327, %v326, 0
        %334 = vmatpush.bf16.xpose.msra.mxu0 0
        %335 = vmatpush.bf16.xpose.msra.mxu0 0
        %336 = vmatpush.bf16.xpose.msra.mxu0 0
        %337 = vmatpush.bf16.xpose.msra.mxu0 0
        %338 = vmatpush.bf16.xpose.msra.mxu0 0
        %339 = vmatpush.bf16.xpose.msra.mxu0 0
        %340 = vmatpush.bf16.xpose.msra.mxu0 0
        %341 = vmatpush.bf16.xpose.msra.mxu0 %v332
        %342 = vmatmul.bf16.gmra.mxu0 %v329
        %v343 = vpop.f32.mrf.mxu0
        %v344 = vadd.f32 %v320, %v343
        %v345 = vpop.f32.mrf.mxu0
        %346 = vdwg.mxu0
        %v347 = vsel %vm327, %v344, -inf
        %348 = vmax.xlane.f32.xlu0 %v347
        %v349 = vpop.xlane.xlu0 %348
        %v350 = vsub.f32 %v344, %v349
        %v351 = vmul.f32 %v350, 1.442695
        %v352 = vpow.pop %v351
        %v353 = vsel %vm327, %v352, 0.0
        %354 = vadd.xlane.f32.xlu0 %v353
        %v355 = vpop.xlane.xlu0 %354
        %v356 = vpack.c.bf16 %v352, %v352
        %357 = vrot.lane.b32.xlu0 %v324, 64
        %v358 = vpop.permute.xlu0 %357
        %v360 = vsel %vm327, %v356, 0
        %vm362 = vcmask 1043456
        %v364 = vsel %vm362, %v358, 0
        %366 = vmatpush.bf16.msra.mxu0 0
        %367 = vmatpush.bf16.msra.mxu0 0
        %368 = vmatpush.bf16.msra.mxu0 0
        %369 = vmatpush.bf16.msra.mxu0 0
        %370 = vmatpush.bf16.msra.mxu0 0
        %371 = vmatpush.bf16.msra.mxu0 0
        %372 = vmatpush.bf16.msra.mxu0 0
        %373 = vmatpush.bf16.msra.mxu0 %v364
        %374 = vmatmul.bf16.gmra.mxu0 %v360
        %v375 = vpop.f32.mrf.mxu0
        %v376 = vadd.f32 0.0, %v375
        %v377 = vpop.f32.mrf.mxu0
        %378 = vdwg.mxu0
        %v379 = vrcp.pop %v355
        %v380 = vmul.f32 %v376, %v379
        %381 = vst.msk [vmem:[%s270] sm:$0xff] %vm327, %v380
        %382 = vrot.lane.b32.xlu0 %v324, 120
        %v383 = vpop.permute.xlu0 %382
        %384 = vrot.lane.b32.xlu0 %v324, 88
        %v385 = vpop.permute.xlu0 %384
        %v387 = vsel %vm327, %v383, 0
        %v390 = vsel %vm327, %v385, 0
        %392 = vmatpush.bf16.xpose.msra.mxu0 0
        %393 = vmatpush.bf16.xpose.msra.mxu0 0
        %394 = vmatpush.bf16.xpose.msra.mxu0 0
        %395 = vmatpush.bf16.xpose.msra.mxu0 0
        %396 = vmatpush.bf16.xpose.msra.mxu0 0
        %397 = vmatpush.bf16.xpose.msra.mxu0 0
        %398 = vmatpush.bf16.xpose.msra.mxu0 0
        %399 = vmatpush.bf16.xpose.msra.mxu0 %v390
        %400 = vmatmul.bf16.gmra.mxu0 %v387
        %v401 = vpop.f32.mrf.mxu0
        %v402 = vadd.f32 %v320, %v401
        %v403 = vpop.f32.mrf.mxu0
        %404 = vdwg.mxu0
        %v405 = vsel %vm327, %v402, -inf
        %406 = vmax.xlane.f32.xlu0 %v405
        %v407 = vpop.xlane.xlu0 %406
        %v408 = vsub.f32 %v402, %v407
        %v409 = vmul.f32 %v408, 1.442695
        %v410 = vpow.pop %v409
        %v411 = vsel %vm327, %v410, 0.0
        %412 = vadd.xlane.f32.xlu0 %v411
        %v413 = vpop.xlane.xlu0 %412
        %v414 = vpack.c.bf16 %v410, %v410
        %415 = vrot.lane.b32.xlu0 %v324, 56
        %v416 = vpop.permute.xlu0 %415
        %v418 = vsel %vm327, %v414, 0
        %v421 = vsel %vm362, %v416, 0
        %423 = vmatpush.bf16.msra.mxu0 0
        %424 = vmatpush.bf16.msra.mxu0 0
        %425 = vmatpush.bf16.msra.mxu0 0
        %426 = vmatpush.bf16.msra.mxu0 0
        %427 = vmatpush.bf16.msra.mxu0 0
        %428 = vmatpush.bf16.msra.mxu0 0
        %429 = vmatpush.bf16.msra.mxu0 0
        %430 = vmatpush.bf16.msra.mxu0 %v421
        %431 = vmatmul.bf16.gmra.mxu0 %v418
        %v432 = vpop.f32.mrf.mxu0
        %v433 = vadd.f32 0.0, %v432
        %v434 = vpop.f32.mrf.mxu0
        %435 = vdwg.mxu0
        %v436 = vrcp.pop %v413
        %v437 = vmul.f32 %v433, %v436
        %439 = vrot.lane.b32.xlu0 %v437, 8
        %v440 = vpop.permute.xlu0 %439
        %vm442 = vcmask 130112
        %443 = vst.msk [vmem:[%s270] sm:$0xff] %vm442, %v440
        %444 = vrot.lane.b32.xlu0 %v324, 112
        %v445 = vpop.permute.xlu0 %444
        %446 = vrot.lane.b32.xlu0 %v324, 80
        %v447 = vpop.permute.xlu0 %446
        %v449 = vsel %vm327, %v445, 0
        %v452 = vsel %vm327, %v447, 0
        %454 = vmatpush.bf16.xpose.msra.mxu0 0
        %455 = vmatpush.bf16.xpose.msra.mxu0 0
        %456 = vmatpush.bf16.xpose.msra.mxu0 0
        %457 = vmatpush.bf16.xpose.msra.mxu0 0
        %458 = vmatpush.bf16.xpose.msra.mxu0 0
        %459 = vmatpush.bf16.xpose.msra.mxu0 0
        %460 = vmatpush.bf16.xpose.msra.mxu0 0
        %461 = vmatpush.bf16.xpose.msra.mxu0 %v452
        %462 = vmatmul.bf16.gmra.mxu0 %v449
        %v463 = vpop.f32.mrf.mxu0
        %v464 = vadd.f32 %v320, %v463
        %v465 = vpop.f32.mrf.mxu0
        %466 = vdwg.mxu0
        %v467 = vsel %vm327, %v464, -inf
        %468 = vmax.xlane.f32.xlu0 %v467
        %v469 = vpop.xlane.xlu0 %468
        %v470 = vsub.f32 %v464, %v469
        %v471 = vmul.f32 %v470, 1.442695
        %v472 = vpow.pop %v471
        %v473 = vsel %vm327, %v472, 0.0
        %474 = vadd.xlane.f32.xlu0 %v473
        %v475 = vpop.xlane.xlu0 %474
        %v476 = vpack.c.bf16 %v472, %v472
        %477 = vrot.lane.b32.xlu0 %v324, 48
        %v478 = vpop.permute.xlu0 %477
        %v480 = vsel %vm327, %v476, 0
        %v483 = vsel %vm362, %v478, 0
        %485 = vmatpush.bf16.msra.mxu0 0
        %486 = vmatpush.bf16.msra.mxu0 0
        %487 = vmatpush.bf16.msra.mxu0 0
        %488 = vmatpush.bf16.msra.mxu0 0
        %489 = vmatpush.bf16.msra.mxu0 0
        %490 = vmatpush.bf16.msra.mxu0 0
        %491 = vmatpush.bf16.msra.mxu0 0
        %492 = vmatpush.bf16.msra.mxu0 %v483
        %493 = vmatmul.bf16.gmra.mxu0 %v480
        %v494 = vpop.f32.mrf.mxu0
        %v495 = vadd.f32 0.0, %v494
        %v496 = vpop.f32.mrf.mxu0
        %497 = vdwg.mxu0
        %v498 = vrcp.pop %v475
        %v499 = vmul.f32 %v495, %v498
        %501 = vrot.lane.b32.xlu0 %v499, 16
        %v502 = vpop.permute.xlu0 %501
        %vm504 = vcmask 195712
        %505 = vst.msk [vmem:[%s270] sm:$0xff] %vm504, %v502
        %506 = vrot.lane.b32.xlu0 %v324, 104
        %v507 = vpop.permute.xlu0 %506
        %508 = vrot.lane.b32.xlu0 %v324, 72
        %v509 = vpop.permute.xlu0 %508
        %v511 = vsel %vm327, %v507, 0
        %v514 = vsel %vm327, %v509, 0
        %516 = vmatpush.bf16.xpose.msra.mxu0 0
        %517 = vmatpush.bf16.xpose.msra.mxu0 0
        %518 = vmatpush.bf16.xpose.msra.mxu0 0
        %519 = vmatpush.bf16.xpose.msra.mxu0 0
        %520 = vmatpush.bf16.xpose.msra.mxu0 0
        %521 = vmatpush.bf16.xpose.msra.mxu0 0
        %522 = vmatpush.bf16.xpose.msra.mxu0 0
        %523 = vmatpush.bf16.xpose.msra.mxu0 %v514
        %524 = vmatmul.bf16.gmra.mxu0 %v511
        %v525 = vpop.f32.mrf.mxu0
        %v526 = vadd.f32 %v320, %v525
        %v527 = vpop.f32.mrf.mxu0
        %528 = vdwg.mxu0
        %v529 = vsel %vm327, %v526, -inf
        %530 = vmax.xlane.f32.xlu0 %v529
        %v531 = vpop.xlane.xlu0 %530
        %v532 = vsub.f32 %v526, %v531
        %v533 = vmul.f32 %v532, 1.442695
        %v534 = vpow.pop %v533
        %v535 = vsel %vm327, %v534, 0.0
        %536 = vadd.xlane.f32.xlu0 %v535
        %v537 = vpop.xlane.xlu0 %536
        %v538 = vpack.c.bf16 %v534, %v534
        %539 = vrot.lane.b32.xlu0 %v324, 40
        %v540 = vpop.permute.xlu0 %539
        %v542 = vsel %vm327, %v538, 0
        %v545 = vsel %vm362, %v540, 0
        %547 = vmatpush.bf16.msra.mxu0 0
        %548 = vmatpush.bf16.msra.mxu0 0
        %549 = vmatpush.bf16.msra.mxu0 0
        %550 = vmatpush.bf16.msra.mxu0 0
        %551 = vmatpush.bf16.msra.mxu0 0
        %552 = vmatpush.bf16.msra.mxu0 0
        %553 = vmatpush.bf16.msra.mxu0 0
        %554 = vmatpush.bf16.msra.mxu0 %v545
        %555 = vmatmul.bf16.gmra.mxu0 %v542
        %v556 = vpop.f32.mrf.mxu0
        %v557 = vadd.f32 0.0, %v556
        %v558 = vpop.f32.mrf.mxu0
        %559 = vdwg.mxu0
        %v560 = vrcp.pop %v537
        %v561 = vmul.f32 %v557, %v560
        %563 = vrot.lane.b32.xlu0 %v561, 24
        %v564 = vpop.permute.xlu0 %563
        %vm566 = vcmask 261312
        %567 = vst.msk [vmem:[%s270] sm:$0xff] %vm566, %v564
        %s568 = sand.u32 %s138, 1
        %s569 = scalar_lea.sflag [#allocation4], %s568
        %s570 = sand.u32 %s138, 1
        %s571 = smul.addr %s570, 8
        %s572 = scalar_lea.vmem [#allocation8], %s571
        // Predicated region
        $region49: #{tpu_custom_call.1} parent=35 // pred_check
          %p573 = pneg %p148
        $region50: #{tpu_custom_call.1} parent=35 // pred_check_branch
          %575 = sbr.rel (%p573) target = $region52
        $region51: #{tpu_custom_call.1} parent=35 // pred_region
          %577 = vsyncadd %s569, 0
          %s578 = sadd.s32 %s27, %s26
          %s579 = smul.addr %s578, 8
          %s580 = scalar_lea.hbm %s4, %s579
          %s582 = sshll.u32 %s572, 4
          %s583 = int_to_ptr.vmem [resolvable:$true] %s582
          %s584 = sshll.u32 %s580, 4
          %s585 = int_to_ptr.hbm [resolvable:$true] %s584
          %587 = dma.vmem_to_hbm [thread:$0]  %s583, 128, %s585, %s569
        $region52: #{tpu_custom_call.1} parent=35 // pred_fallthru
          _
      $region36: #{tpu_custom_call.1} parent=5 // pred_fallthru
        _
      %p588 = scmp.le.s32.totalorder 2, %s17
      // Predicated region
      $region53: #{tpu_custom_call.1} parent=5 // pred_check
        %p589 = pneg %p588
      $region54: #{tpu_custom_call.1} parent=5 // pred_check_branch
        %591 = sbr.rel (%p589) target = $region56
      $region55: #{tpu_custom_call.1} parent=5 // pred_region
        %s592 = ssub.s32 %s17, 2
        // Predicated region
        $region57: #{tpu_custom_call.1} parent=55 // pred_check
          %p593 = pneg %p154
        $region58: #{tpu_custom_call.1} parent=55 // pred_check_branch
          %595 = sbr.rel (%p593) target = $region60
        $region59: #{tpu_custom_call.1} parent=55 // pred_region
          %s596 = sand.u32 %s139, 1
          %s597 = scalar_lea.sflag [#allocation4], %s596
          %s598 = sand.u32 %s139, 1
          %s599 = smul.addr %s598, 8
          %s600 = scalar_lea.vmem [#allocation8], %s599
          %602 = dma.done %s597, 128
        $region60: #{tpu_custom_call.1} parent=55 // pred_fallthru
          _
      $region56: #{tpu_custom_call.1} parent=5 // pred_fallthru
        _
    $region6: #{tpu_custom_call.1} parent=1 // loop_footer
      %s21 = sadd.s32 1, %s17
    $region7: #{tpu_custom_call.1} parent=1 // loop_footer_branch
      %16 = sbr.rel target = $region3
    $region8: #{tpu_custom_call.1} parent=1 // loop_exit
      _
    %603 = vsyncpa [#allocation3], 1
    %s604 = scalar_lea.sflag [#allocation3], 1
    %605 = vsyncpa %s604, 1
    %606 = vsyncpa [#allocation6], 1
    %607 = vsyncpa [#allocation4], 1
    %s608 = scalar_lea.sflag [#allocation4], 1
    %609 = vsyncpa %s608, 1

// kernel: tpu_custom_call.1
$region0: #{tpu_custom_call.1}
  #allocation0 [shape = 'u32[]', space=smem, size = 0x4, offset = 0x4, fixed_abs, tag = 'smem constant byte address 0x4 - core index']
  #allocation1 [shape = 'u32[72,128]{1,0:T(1,128)}', space=vmem, size = 0x9000, scoped, tag = 'internal scratch']
  %s0 = inlined_call_operand.hbm [shape: bf16[2,8,32], index: 0, kind: input, shape index: {}]
  %s1 = inlined_call_operand.hbm [shape: bf16[1,32,96], index: 1, kind: input, shape index: {}]
  %s2 = inlined_call_operand.hbm [shape: f32[1,1,96], index: 2, kind: input, shape index: {}]
  %s3 = inlined_call_operand.vmem [shape: f32[2,1,8], index: 3, kind: input, shape index: {}]
  %s4 = inlined_call_operand.hbm [shape: f32[2,8,32], index: 4, kind: output, shape index: {}]
  %s5 = sld [smem:[#allocation0]]
  $region61: #{tpu_custom_call.1} parent=0
    _
  %s7 = ssub.s32 1, %s5
  %s8 = scalar_select 0, %s7, %s5
  $region1: #{tpu_custom_call.1} parent=0
    #allocation2 [shape = 'u8[4096]{0}', space=vmem, size = 0x1000, scoped, tag = 'input window, operand 0']
    #allocation3 [shape = 's32[2]{0}', space=sflag, size = 0x8, scoped, tag = 'scoped memory for tpu_custom_call.1']
    #allocation4 [shape = 's32[2]{0}', space=sflag, size = 0x8, scoped, tag = 'scoped memory for tpu_custom_call.1']
    #allocation5 [shape = 'u8[8192]{0}', space=vmem, size = 0x2000, scoped, tag = 'input window, operand 1, single buffered']
    #allocation6 [shape = 's32[1]{0}', space=sflag, size = 0x4, scoped, tag = 'scoped memory for tpu_custom_call.1']
    #allocation7 [shape = 'u8[512]{0}', space=vmem, size = 0x400, scoped, tag = 'input window, operand 2, single buffered']
    #allocation8 [shape = 'u8[8192]{0}', space=vmem, size = 0x2000, scoped, tag = 'output window, operand 0']
    %9 = vsyncpa [#allocation3], 0
    %s10 = scalar_lea.sflag [#allocation3], 1
    %11 = vsyncpa %s10, 0
    %12 = vsyncpa [#allocation6], 0
    %13 = vsyncpa [#allocation4], 0
    %s14 = scalar_lea.sflag [#allocation4], 1
    %15 = vsyncpa %s14, 0
    loop: start=0, step=1, limit=4
    $region2: #{tpu_custom_call.1} parent=1 // loop_pre_header
      _
    $region3: #{tpu_custom_call.1} parent=1 // loop_header
      %s17 = sphi 0, %s21
      %p18 = scmp.ge.s32.totalorder %s17, 4
      %s24 = sphi 0, %s36
      %s25 = sphi 0, %s32
      %s26 = sphi 0, %s24
      %s27 = sphi 0, %s25
      %s28 = sphi 0, %s26
      %s29 = sphi 0, %s27
      %s39 = sphi 0, %s41
      %s42 = sphi 0, %s39
      %s43 = sphi 0, %s42
      %s59 = sphi 0, %s43
      %s63 = sphi 0, %s63
      %s65 = sphi 0, %s63
      %s66 = sphi 0, %s65
      %s80 = sphi 0, %s66
      %s84 = sphi 0, %s84
      %s86 = sphi 0, %s84
      %s87 = sphi 0, %s86
      %s101 = sphi 0, %s87
      %s107 = sphi 0, %s109
      %s110 = sphi 0, %s107
      %s111 = sphi 0, %s110
      %s127 = sphi 0, %s111
      %s135 = sphi 0, %s137
      %s138 = sphi 0, %s135
      %s139 = sphi 0, %s138
      %s155 = sphi 0, %s139
    $region4: #{tpu_custom_call.1} parent=1 // loop_header_branch
      %20 = sbr.rel (%p18) target = $region8
    $region5: #{tpu_custom_call.1} parent=1 // loop_body
      %s22 = ssub.s32 %s17, 1
      %s23 = ssub.s32 %s17, 2
      %s30 = sadd.s32 1, %s25
      %p31 = scmp.ge.s32.totalorder %s30, 1
      %s32 = scalar_select %p31, 0, %s30
      %s33 = sadd.s32 1, %s24
      %s34 = scalar_select %p31, %s33, %s24
      %p35 = scmp.ge.s32.totalorder %s34, 2
      %s36 = scalar_select %p35, 0, %s34
      %s37 = ssub.s32 %s24, %s36
      %p38 = scmp.eq.s32.totalorder %s37, 0
      %s40 = sadd.s32 %s39, 1
      %s41 = scalar_select %p38, %s39, %s40
      %p44 = pneg %p38
      %p45 = scmp.eq.s32.totalorder %s17, 1
      %p46 = por %p44, %p45
      %p47 = scmp.ne.s32.totalorder %s39, %s42
      %p48 = scmp.eq.s32.totalorder %s17, 0
      %p49 = por %p47, %p48
      %p50 = scmp.ne.s32.totalorder %s39, %s42
      %p51 = scmp.eq.s32.totalorder %s22, 1
      %p52 = por %p50, %p51
      %p53 = scmp.ne.s32.totalorder %s42, %s43
      %p54 = scmp.eq.s32.totalorder %s22, 0
      %p55 = por %p53, %p54
      %p56 = scmp.ne.s32.totalorder %s42, %s43
      %p57 = scmp.eq.s32.totalorder %s23, 1
      %p58 = por %p56, %p57
      %p60 = scmp.ne.s32.totalorder %s43, %s59
      %p61 = scmp.eq.s32.totalorder %s23, 0
      %p62 = por %p60, %p61
      %s64 = sadd.s32 %s63, 1
      %p67 = scmp.eq.s32.totalorder %s17, 1
      %p68 = scmp.ne.s32.totalorder %s63, %s65
      %p69 = scmp.eq.s32.totalorder %s17, 0
      %p70 = por %p68, %p69
      %p71 = scmp.ne.s32.totalorder %s63, %s65
      %p72 = scmp.eq.s32.totalorder %s22, 1
      %p73 = por %p71, %p72
      %p74 = scmp.ne.s32.totalorder %s65, %s66
      %p75 = scmp.eq.s32.totalorder %s22, 0
      %p76 = por %p74, %p75
      %p77 = scmp.ne.s32.totalorder %s65, %s66
      %p78 = scmp.eq.s32.totalorder %s23, 1
      %p79 = por %p77, %p78
      %p81 = scmp.ne.s32.totalorder %s66, %s80
      %p82 = scmp.eq.s32.totalorder %s23, 0
      %p83 = por %p81, %p82
      %s85 = sadd.s32 %s84, 1
      %p88 = scmp.eq.s32.totalorder %s17, 1
      %p89 = scmp.ne.s32.totalorder %s84, %s86
      %p90 = scmp.eq.s32.totalorder %s17, 0
      %p91 = por %p89, %p90
      %p92 = scmp.ne.s32.totalorder %s84, %s86
      %p93 = scmp.eq.s32.totalorder %s22, 1
      %p94 = por %p92, %p93
      %p95 = scmp.ne.s32.totalorder %s86, %s87
      %p96 = scmp.eq.s32.totalorder %s22, 0
      %p97 = por %p95, %p96
      %p98 = scmp.ne.s32.totalorder %s86, %s87
      %p99 = scmp.eq.s32.totalorder %s23, 1
      %p100 = por %p98, %p99
      %p102 = scmp.ne.s32.totalorder %s87, %s101
      %p103 = scmp.eq.s32.totalorder %s23, 0
      %p104 = por %p102, %p103
      %s105 = ssub.s32 %s24, %s36
      %p106 = scmp.eq.s32.totalorder %s105, 0
      %s108 = sadd.s32 %s107, 1
      %s109 = scalar_select %p106, %s107, %s108
      %p112 = pneg %p106
      %p113 = scmp.eq.s32.totalorder %s17, 1
      %p114 = por %p112, %p113
      %p115 = scmp.ne.s32.totalorder %s107, %s110
      %p116 = scmp.eq.s32.totalorder %s17, 0
      %p117 = por %p115, %p116
      %p118 = scmp.ne.s32.totalorder %s107, %s110
      %p119 = scmp.eq.s32.totalorder %s22, 1
      %p120 = por %p118, %p119
      %p121 = scmp.ne.s32.totalorder %s110, %s111
      %p122 = scmp.eq.s32.totalorder %s22, 0
      %p123 = por %p121, %p122
      %p124 = scmp.ne.s32.totalorder %s110, %s111
      %p125 = scmp.eq.s32.totalorder %s23, 1
      %p126 = por %p124, %p125
      %p128 = scmp.ne.s32.totalorder %s111, %s127
      %p129 = scmp.eq.s32.totalorder %s23, 0
      %p130 = por %p128, %p129
      %s131 = ssub.s32 %s24, %s36
      %s132 = ssub.s32 %s25, %s32
      %s133 = sor.u32 %s131, %s132
      %p134 = scmp.eq.s32.totalorder %s133, 0
      %s136 = sadd.s32 %s135, 1
      %s137 = scalar_select %p134, %s135, %s136
      %p140 = pneg %p134
      %p141 = scmp.eq.s32.totalorder %s17, 1
      %p142 = por %p140, %p141
      %p143 = scmp.ne.s32.totalorder %s135, %s138
      %p144 = scmp.eq.s32.totalorder %s17, 0
      %p145 = por %p143, %p144
      %p146 = scmp.ne.s32.totalorder %s135, %s138
      %p147 = scmp.eq.s32.totalorder %s22, 1
      %p148 = por %p146, %p147
      %p149 = scmp.ne.s32.totalorder %s138, %s139
      %p150 = scmp.eq.s32.totalorder %s22, 0
      %p151 = por %p149, %p150
      %p152 = scmp.ne.s32.totalorder %s138, %s139
      %p153 = scmp.eq.s32.totalorder %s23, 1
      %p154 = por %p152, %p153
      %p156 = scmp.ne.s32.totalorder %s139, %s155
      %p157 = scmp.eq.s32.totalorder %s23, 0
      %p158 = por %p156, %p157
      %p159 = scmp.le.s32.totalorder 1, %s17
      %p160 = scmp.lt.s32.totalorder %s17, 3
      %p161 = pnand %p159, %p160
      %p162 = pneg %p161
      // Predicated region
      $region9: #{tpu_custom_call.1} parent=5 // pred_check
        _
      $region10: #{tpu_custom_call.1} parent=5 // pred_check_branch
        %164 = sbr.rel (%p161) target = $region12
      $region11: #{tpu_custom_call.1} parent=5 // pred_region
        %s165 = ssub.s32 %s17, 1
        // Predicated region
        $region13: #{tpu_custom_call.1} parent=11 // pred_check
          %p166 = pneg %p76
        $region14: #{tpu_custom_call.1} parent=11 // pred_check_branch
          %168 = sbr.rel (%p166) target = $region16
        $region15: #{tpu_custom_call.1} parent=11 // pred_region
          %170 = vsyncadd [#allocation6], 0
          %s171 = sshll.u32 %s1, 4
          %s172 = int_to_ptr.hbm [resolvable:$true] %s171
          %s173 = sshll.u32 [#allocation5], 4
          %s174 = int_to_ptr.vmem [resolvable:$true] %s173
          %179 = dma.hbm_to_vmem [thread:$0]  %s172, 256, %s174, [#allocation6], 64, 64, 4
        $region16: #{tpu_custom_call.1} parent=11 // pred_fallthru
          _
        // Predicated region
        $region17: #{tpu_custom_call.1} parent=11 // pred_check
          %p180 = pneg %p97
        $region18: #{tpu_custom_call.1} parent=11 // pred_check_branch
          %182 = sbr.rel (%p180) target = $region20
        $region19: #{tpu_custom_call.1} parent=11 // pred_region
          %184 = vsyncadd [#allocation6], 0
          %s186 = sshll.u32 %s2, 4
          %s187 = int_to_ptr.hbm [resolvable:$true] %s186
          %s188 = sshll.u32 [#allocation7], 4
          %s189 = int_to_ptr.vmem [resolvable:$true] %s188
          %191 = dma.hbm_to_vmem [thread:$0]  %s187, 16, %s189, [#allocation6]
        $region20: #{tpu_custom_call.1} parent=11 // pred_fallthru
          _
      $region12: #{tpu_custom_call.1} parent=5 // pred_fallthru
        _
      %p192 = scmp.lt.s32.totalorder %s17, 2
      // Predicated region
      $region21: #{tpu_custom_call.1} parent=5 // pred_check
        %p193 = pneg %p192
      $region22: #{tpu_custom_call.1} parent=5 // pred_check_branch
        %195 = sbr.rel (%p193) target = $region24
      $region23: #{tpu_custom_call.1} parent=5 // pred_region
        // Predicated region
        $region25: #{tpu_custom_call.1} parent=23 // pred_check
          %p196 = pneg %p49
        $region26: #{tpu_custom_call.1} parent=23 // pred_check_branch
          %198 = sbr.rel (%p196) target = $region28
        $region27: #{tpu_custom_call.1} parent=23 // pred_region
          %s199 = sand.u32 %s39, 1
          %s200 = scalar_lea.sflag [#allocation3], %s199
          %s201 = sand.u32 %s39, 1
          %s202 = smul.addr %s201, 4
          %s203 = scalar_lea.vmem [#allocation2], %s202
          %205 = vsyncadd %s200, 0
          %s206 = smul.addr %s24, 4
          %s207 = scalar_lea.hbm %s0, %s206
          %s209 = sshll.u32 %s207, 4
          %s210 = int_to_ptr.hbm [resolvable:$true] %s209
          %s211 = sshll.u32 %s203, 4
          %s212 = int_to_ptr.vmem [resolvable:$true] %s211
          %214 = dma.hbm_to_vmem [thread:$0]  %s210, 64, %s212, %s200
        $region28: #{tpu_custom_call.1} parent=23 // pred_fallthru
          _
        // Predicated region
        $region29: #{tpu_custom_call.1} parent=23 // pred_check
          %p215 = pneg %p117
        $region30: #{tpu_custom_call.1} parent=23 // pred_check_branch
          %217 = sbr.rel (%p215) target = $region32
        $region31: #{tpu_custom_call.1} parent=23 // pred_region
          %p218 = scmp.lt.s32.totalorder %s24, 1
          %s219 = scalar_select %p218, %s24, 1
          %s220 = scalar_lea.vmem %s3, %s219
        $region32: #{tpu_custom_call.1} parent=23 // pred_fallthru
          _
      $region24: #{tpu_custom_call.1} parent=5 // pred_fallthru
        _
      %p221 = scmp.le.s32.totalorder 1, %s17
      %p222 = scmp.lt.s32.totalorder %s17, 3
      %p223 = pnand %p221, %p222
      %p224 = pneg %p223
      // Predicated region
      $region33: #{tpu_custom_call.1} parent=5 // pred_check
        _
      $region34: #{tpu_custom_call.1} parent=5 // pred_check_branch
        %226 = sbr.rel (%p223) target = $region36
      $region35: #{tpu_custom_call.1} parent=5 // pred_region
        %s227 = ssub.s32 %s17, 1
        %s228 = sand.u32 %s42, 1
        %s229 = scalar_lea.sflag [#allocation3], %s228
        %s230 = sand.u32 %s42, 1
        %s231 = smul.addr %s230, 4
        %s232 = scalar_lea.vmem [#allocation2], %s231
        // Predicated region
        $region37: #{tpu_custom_call.1} parent=35 // pred_check
          %p233 = pneg %p55
        $region38: #{tpu_custom_call.1} parent=35 // pred_check_branch
          %235 = sbr.rel (%p233) target = $region40
        $region39: #{tpu_custom_call.1} parent=35 // pred_region
          %237 = dma.done %s229, 64
        $region40: #{tpu_custom_call.1} parent=35 // pred_fallthru
          _
        // Predicated region
        $region41: #{tpu_custom_call.1} parent=35 // pred_check
          %p238 = pneg %p76
        $region42: #{tpu_custom_call.1} parent=35 // pred_check_branch
          %240 = sbr.rel (%p238) target = $region44
        $region43: #{tpu_custom_call.1} parent=35 // pred_region
          %242 = dma.done [#allocation6], 256
        $region44: #{tpu_custom_call.1} parent=35 // pred_fallthru
          _
        // Predicated region
        $region45: #{tpu_custom_call.1} parent=35 // pred_check
          %p243 = pneg %p97
        $region46: #{tpu_custom_call.1} parent=35 // pred_check_branch
          %245 = sbr.rel (%p243) target = $region48
        $region47: #{tpu_custom_call.1} parent=35 // pred_region
          %247 = dma.done [#allocation6], 16
        $region48: #{tpu_custom_call.1} parent=35 // pred_fallthru
          _
        %s248 = sand.u32 %s42, 1
        %s249 = scalar_lea.sflag [#allocation3], %s248
        %s250 = sand.u32 %s42, 1
        %s251 = smul.addr %s250, 4
        %s252 = scalar_lea.vmem [#allocation2], %s251
        %p253 = pneg %p55
        %p254 = pneg %p52
        %p255 = pneg %p76
        %p256 = pneg %p73
        %p257 = pneg %p97
        %p258 = pneg %p94
        %p259 = scmp.lt.s32.totalorder %s26, 1
        %s260 = scalar_select %p259, %s26, 1
        %s261 = scalar_lea.vmem %s3, %s260
        %p262 = pneg %p123
        %p263 = pneg %p120
        %p264 = pneg %p151
        %p265 = pneg %p148
        %s266 = sand.u32 %s138, 1
        %s267 = scalar_lea.sflag [#allocation4], %s266
        %s268 = sand.u32 %s138, 1
        %s269 = smul.addr %s268, 8
        %s270 = scalar_lea.vmem [#allocation8], %s269
        %p271 = scmp.lt.s32.totalorder %s26, 1
        %s272 = scalar_select %p271, %s26, 1
        %s273 = scalar_lea.vmem %s3, %s272
        %v275 = vld [vmem:[%s232] sm:$0xf]
        %s276 = smul.u32 %s27, 4
        %s277 = smul.addr %s276, 4
        %s278 = scalar_lea.vmem [#allocation5], %s277
        %v279 = vld [vmem:[%s278] sm:$0xf]
        %v280 = vld [vmem:[%s278 + $0x4] sm:$0xf]
        %v281 = vld [vmem:[%s278 + $0x8] sm:$0xf]
        %v282 = vld [vmem:[%s278 + $0xc] sm:$0xf]
        %s283 = scalar_lea.vmem [#allocation7], %s27
        %v284 = vld [vmem:[%s283] sm:$0x1]
        %v286 = vperm.slane %v284, 0
        %v292 = vunpack.c.l.b16 %v279
        %v293 = vunpack.c.l.b16 %v280
        %v294 = vunpack.c.l.b16 %v281
        %v295 = vunpack.c.l.b16 %v282
        %v296 = vpack.c.b16 %v293, %v292
        %v297 = vpack.c.b16 %v295, %v294
        %vm300 = vcmask 261120
        %v302 = vsel %vm300, %v275, 0
        %304 = vmatpush.bf16.msra.mxu0 0
        %305 = vmatpush.bf16.msra.mxu0 0
        %306 = vmatpush.bf16.msra.mxu0 0
        %307 = vmatpush.bf16.msra.mxu0 0
        %308 = vmatpush.bf16.msra.mxu0 0
        %309 = vmatpush.bf16.msra.mxu0 0
        %310 = vmatpush.bf16.msra.mxu0 %v297
        %311 = vmatpush.bf16.msra.mxu0 %v296
        %312 = vmatmul.bf16.gmra.mxu0 %v302
        %v313 = vpop.f32.mrf.mxu0
        %v314 = vadd.f32 %v286, %v313
        %v315 = vpop.f32.mrf.mxu0
        %316 = vdwg.mxu0
        %v317 = vpack.c.bf16 %v314, %v314
        %v318 = vld [vmem:[%s273] sm:$0x1]
        %v320 = vperm.slane %v318, 0
        %v323 = vunpack.c.l.b16 %v317
        %v324 = vpack.c.b16 %v323, %v323
        %325 = vrot.lane.b32.xlu0 %v324, 96
        %v326 = vpop.permute.xlu0 %325
        %vm327 = vcmask 64512
        %v329 = vsel %vm327, %v317, 0
        %v332 = vsel %vm327, %v326, 0
        %334 = vmatpush.bf16.xpose.msra.mxu0 0
        %335 = vmatpush.bf16.xpose.msra.mxu0 0
        %336 = vmatpush.bf16.xpose.msra.mxu0 0
        %337 = vmatpush.bf16.xpose.msra.mxu0 0
        %338 = vmatpush.bf16.xpose.msra.mxu0 0
        %339 = vmatpush.bf16.xpose.msra.mxu0 0
        %340 = vmatpush.bf16.xpose.msra.mxu0 0
        %341 = vmatpush.bf16.xpose.msra.mxu0 %v332
        %342 = vmatmul.bf16.gmra.mxu0 %v329
        %v343 = vpop.f32.mrf.mxu0
        %v344 = vadd.f32 %v320, %v343
        %v345 = vpop.f32.mrf.mxu0
        %346 = vdwg.mxu0
        %v347 = vsel %vm327, %v344, -inf
        %348 = vmax.xlane.f32.xlu0 %v347
        %v349 = vpop.xlane.xlu0 %348
        %v350 = vsub.f32 %v344, %v349
        %v351 = vmul.f32 %v350, 1.442695
        %v352 = vpow.pop %v351
        %v353 = vsel %vm327, %v352, 0.0
        %354 = vadd.xlane.f32.xlu0 %v353
        %v355 = vpop.xlane.xlu0 %354
        %v356 = vpack.c.bf16 %v352, %v352
        %357 = vrot.lane.b32.xlu0 %v324, 64
        %v358 = vpop.permute.xlu0 %357
        %v360 = vsel %vm327, %v356, 0
        %vm362 = vcmask 1043456
        %v364 = vsel %vm362, %v358, 0
        %366 = vmatpush.bf16.msra.mxu0 0
        %367 = vmatpush.bf16.msra.mxu0 0
        %368 = vmatpush.bf16.msra.mxu0 0
        %369 = vmatpush.bf16.msra.mxu0 0
        %370 = vmatpush.bf16.msra.mxu0 0
        %371 = vmatpush.bf16.msra.mxu0 0
        %372 = vmatpush.bf16.msra.mxu0 0
        %373 = vmatpush.bf16.msra.mxu0 %v364
        %374 = vmatmul.bf16.gmra.mxu0 %v360
        %v375 = vpop.f32.mrf.mxu0
        %v376 = vadd.f32 0.0, %v375
        %v377 = vpop.f32.mrf.mxu0
        %378 = vdwg.mxu0
        %v379 = vrcp.pop %v355
        %v380 = vmul.f32 %v376, %v379
        %381 = vst.msk [vmem:[%s270] sm:$0xff] %vm327, %v380
        %382 = vrot.lane.b32.xlu0 %v324, 120
        %v383 = vpop.permute.xlu0 %382
        %384 = vrot.lane.b32.xlu0 %v324, 88
        %v385 = vpop.permute.xlu0 %384
        %v387 = vsel %vm327, %v383, 0
        %v390 = vsel %vm327, %v385, 0
        %392 = vmatpush.bf16.xpose.msra.mxu0 0
        %393 = vmatpush.bf16.xpose.msra.mxu0 0
        %394 = vmatpush.bf16.xpose.msra.mxu0 0
        %395 = vmatpush.bf16.xpose.msra.mxu0 0
        %396 = vmatpush.bf16.xpose.msra.mxu0 0
        %397 = vmatpush.bf16.xpose.msra.mxu0 0
        %398 = vmatpush.bf16.xpose.msra.mxu0 0
        %399 = vmatpush.bf16.xpose.msra.mxu0 %v390
        %400 = vmatmul.bf16.gmra.mxu0 %v387
        %v401 = vpop.f32.mrf.mxu0
        %v402 = vadd.f32 %v320, %v401
        %v403 = vpop.f32.mrf.mxu0
        %404 = vdwg.mxu0
        %v405 = vsel %vm327, %v402, -inf
        %406 = vmax.xlane.f32.xlu0 %v405
        %v407 = vpop.xlane.xlu0 %406
        %v408 = vsub.f32 %v402, %v407
        %v409 = vmul.f32 %v408, 1.442695
        %v410 = vpow.pop %v409
        %v411 = vsel %vm327, %v410, 0.0
        %412 = vadd.xlane.f32.xlu0 %v411
        %v413 = vpop.xlane.xlu0 %412
        %v414 = vpack.c.bf16 %v410, %v410
        %415 = vrot.lane.b32.xlu0 %v324, 56
        %v416 = vpop.permute.xlu0 %415
        %v418 = vsel %vm327, %v414, 0
        %v421 = vsel %vm362, %v416, 0
        %423 = vmatpush.bf16.msra.mxu0 0
        %424 = vmatpush.bf16.msra.mxu0 0
        %425 = vmatpush.bf16.msra.mxu0 0
        %426 = vmatpush.bf16.msra.mxu0 0
        %427 = vmatpush.bf16.msra.mxu0 0
        %428 = vmatpush.bf16.msra.mxu0 0
        %429 = vmatpush.bf16.msra.mxu0 0
        %430 = vmatpush.bf16.msra.mxu0 %v421
        %431 = vmatmul.bf16.gmra.mxu0 %v418
        %v432 = vpop.f32.mrf.mxu0
        %v433 = vadd.f32 0.0, %v432
        %v434 = vpop.f32.mrf.mxu0
        %435 = vdwg.mxu0
        %v436 = vrcp.pop %v413
        %v437 = vmul.f32 %v433, %v436
        %439 = vrot.lane.b32.xlu0 %v437, 8
        %v440 = vpop.permute.xlu0 %439
        %vm442 = vcmask 130112
        %443 = vst.msk [vmem:[%s270] sm:$0xff] %vm442, %v440
        %444 = vrot.lane.b32.xlu0 %v324, 112
        %v445 = vpop.permute.xlu0 %444
        %446 = vrot.lane.b32.xlu0 %v324, 80
        %v447 = vpop.permute.xlu0 %446
        %v449 = vsel %vm327, %v445, 0
        %v452 = vsel %vm327, %v447, 0
        %454 = vmatpush.bf16.xpose.msra.mxu0 0
        %455 = vmatpush.bf16.xpose.msra.mxu0 0
        %456 = vmatpush.bf16.xpose.msra.mxu0 0
        %457 = vmatpush.bf16.xpose.msra.mxu0 0
        %458 = vmatpush.bf16.xpose.msra.mxu0 0
        %459 = vmatpush.bf16.xpose.msra.mxu0 0
        %460 = vmatpush.bf16.xpose.msra.mxu0 0
        %461 = vmatpush.bf16.xpose.msra.mxu0 %v452
        %462 = vmatmul.bf16.gmra.mxu0 %v449
        %v463 = vpop.f32.mrf.mxu0
        %v464 = vadd.f32 %v320, %v463
        %v465 = vpop.f32.mrf.mxu0
        %466 = vdwg.mxu0
        %v467 = vsel %vm327, %v464, -inf
        %468 = vmax.xlane.f32.xlu0 %v467
        %v469 = vpop.xlane.xlu0 %468
        %v470 = vsub.f32 %v464, %v469
        %v471 = vmul.f32 %v470, 1.442695
        %v472 = vpow.pop %v471
        %v473 = vsel %vm327, %v472, 0.0
        %474 = vadd.xlane.f32.xlu0 %v473
        %v475 = vpop.xlane.xlu0 %474
        %v476 = vpack.c.bf16 %v472, %v472
        %477 = vrot.lane.b32.xlu0 %v324, 48
        %v478 = vpop.permute.xlu0 %477
        %v480 = vsel %vm327, %v476, 0
        %v483 = vsel %vm362, %v478, 0
        %485 = vmatpush.bf16.msra.mxu0 0
        %486 = vmatpush.bf16.msra.mxu0 0
        %487 = vmatpush.bf16.msra.mxu0 0
        %488 = vmatpush.bf16.msra.mxu0 0
        %489 = vmatpush.bf16.msra.mxu0 0
        %490 = vmatpush.bf16.msra.mxu0 0
        %491 = vmatpush.bf16.msra.mxu0 0
        %492 = vmatpush.bf16.msra.mxu0 %v483
        %493 = vmatmul.bf16.gmra.mxu0 %v480
        %v494 = vpop.f32.mrf.mxu0
        %v495 = vadd.f32 0.0, %v494
        %v496 = vpop.f32.mrf.mxu0
        %497 = vdwg.mxu0
        %v498 = vrcp.pop %v475
        %v499 = vmul.f32 %v495, %v498
        %501 = vrot.lane.b32.xlu0 %v499, 16
        %v502 = vpop.permute.xlu0 %501
        %vm504 = vcmask 195712
        %505 = vst.msk [vmem:[%s270] sm:$0xff] %vm504, %v502
        %506 = vrot.lane.b32.xlu0 %v324, 104
        %v507 = vpop.permute.xlu0 %506
        %508 = vrot.lane.b32.xlu0 %v324, 72
        %v509 = vpop.permute.xlu0 %508
        %v511 = vsel %vm327, %v507, 0
        %v514 = vsel %vm327, %v509, 0
        %516 = vmatpush.bf16.xpose.msra.mxu0 0
        %517 = vmatpush.bf16.xpose.msra.mxu0 0
        %518 = vmatpush.bf16.xpose.msra.mxu0 0
        %519 = vmatpush.bf16.xpose.msra.mxu0 0
        %520 = vmatpush.bf16.xpose.msra.mxu0 0
        %521 = vmatpush.bf16.xpose.msra.mxu0 0
        %522 = vmatpush.bf16.xpose.msra.mxu0 0
        %523 = vmatpush.bf16.xpose.msra.mxu0 %v514
        %524 = vmatmul.bf16.gmra.mxu0 %v511
        %v525 = vpop.f32.mrf.mxu0
        %v526 = vadd.f32 %v320, %v525
        %v527 = vpop.f32.mrf.mxu0
        %528 = vdwg.mxu0
        %v529 = vsel %vm327, %v526, -inf
        %530 = vmax.xlane.f32.xlu0 %v529
        %v531 = vpop.xlane.xlu0 %530
        %v532 = vsub.f32 %v526, %v531
        %v533 = vmul.f32 %v532, 1.442695
        %v534 = vpow.pop %v533
        %v535 = vsel %vm327, %v534, 0.0
        %536 = vadd.xlane.f32.xlu0 %v535
        %v537 = vpop.xlane.xlu0 %536
        %v538 = vpack.c.bf16 %v534, %v534
        %539 = vrot.lane.b32.xlu0 %v324, 40
        %v540 = vpop.permute.xlu0 %539
        %v542 = vsel %vm327, %v538, 0
        %v545 = vsel %vm362, %v540, 0
        %547 = vmatpush.bf16.msra.mxu0 0
        %548 = vmatpush.bf16.msra.mxu0 0
        %549 = vmatpush.bf16.msra.mxu0 0
        %550 = vmatpush.bf16.msra.mxu0 0
        %551 = vmatpush.bf16.msra.mxu0 0
        %552 = vmatpush.bf16.msra.mxu0 0
        %553 = vmatpush.bf16.msra.mxu0 0
        %554 = vmatpush.bf16.msra.mxu0 %v545
        %555 = vmatmul.bf16.gmra.mxu0 %v542
        %v556 = vpop.f32.mrf.mxu0
        %v557 = vadd.f32 0.0, %v556
        %v558 = vpop.f32.mrf.mxu0
        %559 = vdwg.mxu0
        %v560 = vrcp.pop %v537
        %v561 = vmul.f32 %v557, %v560
        %563 = vrot.lane.b32.xlu0 %v561, 24
        %v564 = vpop.permute.xlu0 %563
        %vm566 = vcmask 261312
        %567 = vst.msk [vmem:[%s270] sm:$0xff] %vm566, %v564
        %s568 = sand.u32 %s138, 1
        %s569 = scalar_lea.sflag [#allocation4], %s568
        %s570 = sand.u32 %s138, 1
        %s571 = smul.addr %s570, 8
        %s572 = scalar_lea.vmem [#allocation8], %s571
        // Predicated region
        $region49: #{tpu_custom_call.1} parent=35 // pred_check
          %p573 = pneg %p148
        $region50: #{tpu_custom_call.1} parent=35 // pred_check_branch
          %575 = sbr.rel (%p573) target = $region52
        $region51: #{tpu_custom_call.1} parent=35 // pred_region
          %577 = vsyncadd %s569, 0
          %s578 = sadd.s32 %s27, %s26
          %s579 = smul.addr %s578, 8
          %s580 = scalar_lea.hbm %s4, %s579
          %s582 = sshll.u32 %s572, 4
          %s583 = int_to_ptr.vmem [resolvable:$true] %s582
          %s584 = sshll.u32 %s580, 4
          %s585 = int_to_ptr.hbm [resolvable:$true] %s584
          %587 = dma.vmem_to_hbm [thread:$0]  %s583, 128, %s585, %s569
        $region52: #{tpu_custom_call.1} parent=35 // pred_fallthru
          _
      $region36: #{tpu_custom_call.1} parent=5 // pred_fallthru
        _
      %p588 = scmp.le.s32.totalorder 2, %s17
      // Predicated region
      $region53: #{tpu_custom_call.1} parent=5 // pred_check
        %p589 = pneg %p588
      $region54: #{tpu_custom_call.1} parent=5 // pred_check_branch
        %591 = sbr.rel (%p589) target = $region56
      $region55: #{tpu_custom_call.1} parent=5 // pred_region
        %s592 = ssub.s32 %s17, 2
        // Predicated region
        $region57: #{tpu_custom_call.1} parent=55 // pred_check
          %p593 = pneg %p154
        $region58: #{tpu_custom_call.1} parent=55 // pred_check_branch
          %595 = sbr.rel (%p593) target = $region60
        $region59: #{tpu_custom_call.1} parent=55 // pred_region
          %s596 = sand.u32 %s139, 1
          %s597 = scalar_lea.sflag [#allocation4], %s596
          %s598 = sand.u32 %s139, 1
          %s599 = smul.addr %s598, 8
          %s600 = scalar_lea.vmem [#allocation8], %s599
          %602 = dma.done %s597, 128
        $region60: #{tpu_custom_call.1} parent=55 // pred_fallthru
          _
      $region56: #{tpu_custom_call.1} parent=5 // pred_fallthru
        _
    $region6: #{tpu_custom_call.1} parent=1 // loop_footer
      %s21 = sadd.s32 1, %s17
    $region7: #{tpu_custom_call.1} parent=1 // loop_footer_branch
      %16 = sbr.rel target = $region3
    $region8: #{tpu_custom_call.1} parent=1 // loop_exit
      _
    %603 = vsyncpa [#allocation3], 1
    %s604 = scalar_lea.sflag [#allocation3], 1
    %605 = vsyncpa %s604, 1
    %606 = vsyncpa [#allocation6], 1
    %607 = vsyncpa [#allocation4], 1
    %s608 = scalar_lea.sflag [#allocation4], 1
    %609 = vsyncpa %s608, 1

</llo_original>
